<compile_context>
chip_gen: v7x
topology: tpu7x:2x2x1
jax: 0.10.0
libtpu: 0.0.40
codegen_flags: <defaults>
</compile_context>

<pallas_src>
import jax
import jax.numpy as jnp
from jax.experimental import pallas as pl
from jax.experimental.pallas import tpu as pltpu

LANES = 128


# ----------------------------------------------------------------------------
# Weight repacking: (3,3,Cin,Cout) conv weight -> one fused banded matrix so a
# VALID 3x3 conv over lane-dense rows becomes a single matmul per layer:
#   out_row[y] = concat_ki(in_row[y+ki]) @ A_fused
# A_fused[ki*128 + m, n] = w[ki, kj, c, o] with m = win_x*Cin + c,
# n = out_x*Cout + o, kj = win_x - out_x; zero whenever kj not in [0,KW),
# win_x >= w_in (masks roll-wrap / garbage K lanes) or out_x >= w_out
# (zero-pads the output lanes to 128).
# ----------------------------------------------------------------------------
def _banded_fused(w_hwio, w_in, w_out):
    KH, KW, Cin, Cout = w_hwio.shape
    m = jnp.arange(LANES)
    n = jnp.arange(LANES)
    win_x, c = m // Cin, m % Cin
    out_x, o = n // Cout, n % Cout
    kj = win_x[:, None] - out_x[None, :]
    valid = ((kj >= 0) & (kj < KW)
             & (win_x[:, None] < w_in) & (out_x[None, :] < w_out))
    A = w_hwio[:, jnp.clip(kj, 0, KW - 1), c[:, None], o[None, :]]  # (KH,128,128)
    A = jnp.where(valid[None], A, 0.0).astype(jnp.float32)
    return A.reshape(KH * LANES, LANES)


def _lane_bias(b, cout, w_out):
    lane = jnp.arange(LANES)
    return jnp.where(lane < w_out * cout, b.reshape(-1)[lane % cout],
                     0.0).astype(jnp.float32).reshape(1, LANES)


# ----------------------------------------------------------------------------
# Wrapper: NCHW in / NCHW out (PyTorch convention); kernel works lane-dense.
# ----------------------------------------------------------------------------
def siamese_match(search_nchw, obj_nchw, params):
    w1, b1, w2, b2, w3, b3 = params
    B, C, HS, WS = search_nchw.shape
    _, _, HK, WK = obj_nchw.shape
    HO, WO = HS - HK + 1, WS - WK + 1          # xcorr output
    H1, W1 = HO - 2, WO - 2                    # after conv1 (3x3 VALID)
    H2, W2 = H1 - 2, W1 - 2                    # after conv2 (3x3 VALID)
    C1, C2 = w1.shape[-1], w2.shape[-1]
    L = WS * C                                 # lane width of one search row
    ROWS = B * HS                              # folded-batch sublane rows
    PAD = 8                                    # extra rows for shifted ref-loads
    ROWS_PAD = ROWS + PAD

    # -- layout assumptions (correctness concerns flagged in review) ---------
    assert L == LANES, f"kernel assumes one lane tile per row (WS*C == 128), got {L}"
    assert w1.shape[:2] == (3, 3) and w2.shape[:2] == (3, 3)
    assert HK - 1 <= PAD and 2 <= PAD
    assert HO <= HS and H1 <= HS and H2 <= HS and W1 * C1 <= LANES and W2 * C2 <= LANES

    # ---- layout plumbing (wrapper side; fuses into surrounding XLA) --------
    s_nhwc = jnp.transpose(search_nchw, (0, 2, 3, 1)).astype(jnp.float32)
    o_nhwc = jnp.transpose(obj_nchw, (0, 2, 3, 1)).astype(jnp.float32)
    search_pad = jnp.pad(s_nhwc.reshape(ROWS, L), ((0, PAD), (0, 0)))
    # obj tap (i,j) replicated over every (row, w) so the xcorr multiplier is a
    # resident full-vreg slab: obj_tiled[i*WK+j, b*HS+h, w*C+c] = obj[b,i,j,c]
    obj_tiled = jnp.broadcast_to(
        jnp.transpose(o_nhwc, (1, 2, 0, 3))[:, :, :, None, None, :],
        (HK, WK, B, HS, WS, C)).reshape(HK * WK, ROWS, L)

    # ---- weight repacking (done once for real trained weights) -------------
    A1 = _banded_fused(w1, WO, W1)             # (384, 128), K/N zero padded
    A2 = _banded_fused(w2, W1, W2)             # (384, 128)
    b1p = _lane_bias(b1, C1, W1)               # (1, 128)
    b2p = _lane_bias(b2, C2, W2)               # (1, 128)
    m3 = jnp.arange(LANES)
    n3 = jnp.arange(LANES)
    x_of_m, o_of_m = m3 // C2, m3 % C2
    A3 = jnp.where((x_of_m[:, None] == n3[None, :]) & (x_of_m[:, None] < W2)
                   & (n3[None, :] < W2),
                   w3.reshape(-1)[o_of_m][:, None], 0.0).astype(jnp.float32)
    b3s = b3.reshape(1, 1).astype(jnp.float32)

    # ------------------------------------------------------------------------
    # Kernel (grid-less; total resident footprint < 1.5 MiB).
    # ------------------------------------------------------------------------
    def kernel(search_ref, objt_ref, a1_ref, b1_ref, a2_ref, b2_ref,
               a3_ref, b3_ref, score_ref, mmap_ref, h1_scr):
        zeros_pad = jnp.zeros((PAD, L), jnp.float32)

        def tree_sum(xs):
            while len(xs) > 1:
                xs = ([xs[i] + xs[i + 1] for i in range(0, len(xs) - 1, 2)]
                      + ([xs[-1]] if len(xs) % 2 else []))
            return xs[0]

        # ---- depthwise cross-correlation, lane-dense -----------------------
        # mm[b*HS+y, w*C+c] = sum_{i,j} search[b, y+i, (w+j)*C+c] * obj[b,i,j,c]
        # sublane shift i -> ref load at static offset; lane shift j*C -> XLU
        # roll; one independent accumulator per i.
        partials = []
        for i in range(HK):
            s_i = search_ref[i:i + ROWS, :]                    # (ROWS, 128)
            acc_i = s_i * objt_ref[i * WK + 0]
            for j in range(1, WK):
                slab = pltpu.roll(s_i, L - j * C, 1)
                acc_i = acc_i + slab * objt_ref[i * WK + j]
            partials.append(acc_i)
        mm = tree_sum(partials)                                # (ROWS, 128)
        mmap_ref[0:ROWS, :] = mm                               # full-vreg store
        mmap_ref[ROWS:ROWS_PAD, :] = zeros_pad

        # ---- conv1: 3x3 C->C1 as ONE (ROWS,384)x(384,128) matmul -----------
        x1 = jnp.concatenate(
            [mmap_ref[ki:ki + ROWS, :] for ki in range(3)], axis=1)
        h1 = jnp.maximum(
            jnp.dot(x1, a1_ref[...], preferred_element_type=jnp.float32)
            + b1_ref[...], 0.0)                                # (ROWS, 128)
        h1_scr[0:ROWS, :] = h1
        h1_scr[ROWS:ROWS_PAD, :] = zeros_pad

        # ---- conv2: 3x3 C1->C2 ----------------------------------------------
        x2 = jnp.concatenate(
            [h1_scr[ki:ki + ROWS, :] for ki in range(3)], axis=1)
        h2 = jnp.maximum(
            jnp.dot(x2, a2_ref[...], preferred_element_type=jnp.float32)
            + b2_ref[...], 0.0)                                # (ROWS, 128)

        # ---- conv3: 1x1 C2->1 (lane-compacting matmul + SMEM scalar bias) ----
        score_ref[...] = (
            jnp.dot(h2, a3_ref[...], preferred_element_type=jnp.float32)
            + b3_ref[0, 0])                                    # (ROWS, 128)

    in_specs = [pl.BlockSpec(memory_space=pltpu.MemorySpace.VMEM)
                for _ in range(7)]
    in_specs.append(pl.BlockSpec(memory_space=pltpu.MemorySpace.SMEM))

    score_pad, mmap_pad = pl.pallas_call(
        kernel,
        out_shape=(jax.ShapeDtypeStruct((ROWS, L), jnp.float32),       # score slab
                   jax.ShapeDtypeStruct((ROWS_PAD, L), jnp.float32)),  # xcorr slab
        in_specs=in_specs,
        out_specs=(pl.BlockSpec(memory_space=pltpu.MemorySpace.VMEM),
                   pl.BlockSpec(memory_space=pltpu.MemorySpace.VMEM)),
        scratch_shapes=[pltpu.VMEM((ROWS_PAD, L), jnp.float32)],
    )(search_pad, obj_tiled, A1, b1p, A2, b2p, A3, b3s)

    # back to NCHW to match PyTorch (wrapper-side crops drop all padding)
    mmap = mmap_pad[:ROWS].reshape(B, HS, WS, C)[:, :HO, :WO, :]
    match_map = jnp.transpose(mmap, (0, 3, 1, 2))              # (B, C, HO, WO)
    score = score_pad.reshape(B, HS, L)[:, :H2, :W2].reshape(B, 1, H2, W2)
    return score, match_map


# ----------------------------------------------------------------------------
# Pure-JAX reference (lax.conv) for verification.
# ----------------------------------------------------------------------------
def reference_match(search, obj, params):
    w1, b1, w2, b2, w3, b3 = params
    B, C, HK, WK = obj.shape
    HS, WS = search.shape[2], search.shape[3]
    HO, WO = HS - HK + 1, WS - WK + 1

    x = search.reshape(1, B * C, HS, WS)
    k = obj.reshape(B * C, 1, HK, WK)
    mm = jax.lax.conv_general_dilated(
        x, k, (1, 1), 'VALID',
        dimension_numbers=('NCHW', 'OIHW', 'NCHW'),
        feature_group_count=B * C).reshape(B, C, HO, WO)

    def conv3(x, w_hwio, b):
        w_oihw = jnp.transpose(w_hwio, (3, 2, 0, 1))
        y = jax.lax.conv_general_dilated(
            x, w_oihw, (1, 1), 'VALID',
            dimension_numbers=('NCHW', 'OIHW', 'NCHW'))
        return y + b.reshape(1, -1, 1, 1)

    h1 = jnp.maximum(conv3(mm, w1, b1), 0.0)
    h2 = jnp.maximum(conv3(h1, w2, b2), 0.0)
    w3_oihw = jnp.transpose(w3.reshape(1, 1, w3.shape[0], 1), (3, 2, 0, 1))
    score = jax.lax.conv_general_dilated(
        h2, w3_oihw, (1, 1), 'VALID',
        dimension_numbers=('NCHW', 'OIHW', 'NCHW')) + b3.reshape(1, 1, 1, 1)
    return score, mm


def init_params(key, feature_chs):
    C, C1, C2 = feature_chs, feature_chs // 2, feature_chs // 4
    ks = jax.random.split(key, 6)
    w1 = 0.1 * jax.random.normal(ks[0], (3, 3, C, C1), jnp.float32)   # HWIO
    b1 = 0.05 * jax.random.normal(ks[1], (1, C1), jnp.float32)
    w2 = 0.1 * jax.random.normal(ks[2], (3, 3, C1, C2), jnp.float32)  # HWIO
    b2 = 0.05 * jax.random.normal(ks[3], (1, C2), jnp.float32)
    w3 = 0.1 * jax.random.normal(ks[4], (C2, 1), jnp.float32)         # 1x1 conv
    b3 = 0.05 * jax.random.normal(ks[5], (1, 1), jnp.float32)
    return (w1, b1, w2, b2, w3, b3)


if __name__ == "__main__":
    key = jax.random.PRNGKey(0)
    k_obj, k_search, k_par = jax.random.split(key, 3)

    B, C = 2, 8                 # feature_chs = 8 (divisible by 4)
    HS = WS = 16                # search spatial
    HK = WK = 5                 # template (obj) spatial

    search = jax.random.normal(k_search, (B, C, HS, WS), jnp.float32)  # NCHW
    obj = jax.random.normal(k_obj, (B, C, HK, WK), jnp.float32)        # NCHW
    params = init_params(k_par, C)

    score, match_map = siamese_match(search, obj, params)
    jax.block_until_ready((score, match_map))

    ref_score, ref_mm = reference_match(search, obj, params)
    assert score.shape == (B, 1, 8, 8), score.shape
    assert match_map.shape == (B, C, 12, 12), match_map.shape
    assert jnp.allclose(match_map, ref_mm, rtol=1e-4, atol=1e-4)
    assert jnp.allclose(score, ref_score, rtol=1e-4, atol=1e-4)

    print("KERNEL_OK")
</pallas_src>

<mosaic_0001>
module attributes {stable_mosaic.version = 11 : i64} {
  func.func @kernel(%arg0: memref<40x128xf32, #tpu.memory_space<vmem>>, %arg1: memref<25x32x128xf32, #tpu.memory_space<vmem>>, %arg2: memref<384x128xf32, #tpu.memory_space<vmem>>, %arg3: memref<1x128xf32, #tpu.memory_space<vmem>>, %arg4: memref<384x128xf32, #tpu.memory_space<vmem>>, %arg5: memref<1x128xf32, #tpu.memory_space<vmem>>, %arg6: memref<128x128xf32, #tpu.memory_space<vmem>>, %arg7: memref<1x1xf32, #tpu.memory_space<smem>>, %arg8: memref<32x128xf32, #tpu.memory_space<vmem>>, %arg9: memref<40x128xf32, #tpu.memory_space<vmem>>, %arg10: memref<40x128xf32, #tpu.memory_space<vmem>>) attributes {dimension_semantics = [], scalar_prefetch = 0 : i64, scratch_operands = 1 : i64, tpu.core_type = #tpu.core_type<tc>} {
    %cst = arith.constant 0.000000e+00 : f32
    %0 = vector.broadcast %cst : f32 to vector<8x128xf32>
    %c0 = arith.constant 0 : index
    %c0_0 = arith.constant 0 : index
    %1 = vector.load %arg0[%c0, %c0_0] : memref<40x128xf32, #tpu.memory_space<vmem>>, vector<32x128xf32>
    %c0_1 = arith.constant 0 : index
    %c0_2 = arith.constant 0 : index
    %c0_3 = arith.constant 0 : index
    %2 = vector.load %arg1[%c0_1, %c0_2, %c0_3] : memref<25x32x128xf32, #tpu.memory_space<vmem>>, vector<1x32x128xf32>
    %3 = vector.shape_cast %2 : vector<1x32x128xf32> to vector<32x128xf32>
    %4 = arith.mulf %1, %3 : vector<32x128xf32>
    %c120_i32 = arith.constant 120 : i32
    %5 = tpu.dynamic_rotate %1 by %c120_i32 dim 1 : vector<32x128xf32>, i32 -> vector<32x128xf32>
    %c1 = arith.constant 1 : index
    %c0_4 = arith.constant 0 : index
    %c0_5 = arith.constant 0 : index
    %6 = vector.load %arg1[%c1, %c0_4, %c0_5] : memref<25x32x128xf32, #tpu.memory_space<vmem>>, vector<1x32x128xf32>
    %7 = vector.shape_cast %6 : vector<1x32x128xf32> to vector<32x128xf32>
    %8 = arith.mulf %5, %7 : vector<32x128xf32>
    %9 = arith.addf %4, %8 : vector<32x128xf32>
    %c112_i32 = arith.constant 112 : i32
    %10 = tpu.dynamic_rotate %1 by %c112_i32 dim 1 : vector<32x128xf32>, i32 -> vector<32x128xf32>
    %c2 = arith.constant 2 : index
    %c0_6 = arith.constant 0 : index
    %c0_7 = arith.constant 0 : index
    %11 = vector.load %arg1[%c2, %c0_6, %c0_7] : memref<25x32x128xf32, #tpu.memory_space<vmem>>, vector<1x32x128xf32>
    %12 = vector.shape_cast %11 : vector<1x32x128xf32> to vector<32x128xf32>
    %13 = arith.mulf %10, %12 : vector<32x128xf32>
    %14 = arith.addf %9, %13 : vector<32x128xf32>
    %c104_i32 = arith.constant 104 : i32
    %15 = tpu.dynamic_rotate %1 by %c104_i32 dim 1 : vector<32x128xf32>, i32 -> vector<32x128xf32>
    %c3 = arith.constant 3 : index
    %c0_8 = arith.constant 0 : index
    %c0_9 = arith.constant 0 : index
    %16 = vector.load %arg1[%c3, %c0_8, %c0_9] : memref<25x32x128xf32, #tpu.memory_space<vmem>>, vector<1x32x128xf32>
    %17 = vector.shape_cast %16 : vector<1x32x128xf32> to vector<32x128xf32>
    %18 = arith.mulf %15, %17 : vector<32x128xf32>
    %19 = arith.addf %14, %18 : vector<32x128xf32>
    %c96_i32 = arith.constant 96 : i32
    %20 = tpu.dynamic_rotate %1 by %c96_i32 dim 1 : vector<32x128xf32>, i32 -> vector<32x128xf32>
    %c4 = arith.constant 4 : index
    %c0_10 = arith.constant 0 : index
    %c0_11 = arith.constant 0 : index
    %21 = vector.load %arg1[%c4, %c0_10, %c0_11] : memref<25x32x128xf32, #tpu.memory_space<vmem>>, vector<1x32x128xf32>
    %22 = vector.shape_cast %21 : vector<1x32x128xf32> to vector<32x128xf32>
    %23 = arith.mulf %20, %22 : vector<32x128xf32>
    %24 = arith.addf %19, %23 : vector<32x128xf32>
    %c1_12 = arith.constant 1 : index
    %c0_13 = arith.constant 0 : index
    %25 = vector.load %arg0[%c1_12, %c0_13] : memref<40x128xf32, #tpu.memory_space<vmem>>, vector<32x128xf32>
    %c5 = arith.constant 5 : index
    %c0_14 = arith.constant 0 : index
    %c0_15 = arith.constant 0 : index
    %26 = vector.load %arg1[%c5, %c0_14, %c0_15] : memref<25x32x128xf32, #tpu.memory_space<vmem>>, vector<1x32x128xf32>
    %27 = vector.shape_cast %26 : vector<1x32x128xf32> to vector<32x128xf32>
    %28 = arith.mulf %25, %27 : vector<32x128xf32>
    %c120_i32_16 = arith.constant 120 : i32
    %29 = tpu.dynamic_rotate %25 by %c120_i32_16 dim 1 : vector<32x128xf32>, i32 -> vector<32x128xf32>
    %c6 = arith.constant 6 : index
    %c0_17 = arith.constant 0 : index
    %c0_18 = arith.constant 0 : index
    %30 = vector.load %arg1[%c6, %c0_17, %c0_18] : memref<25x32x128xf32, #tpu.memory_space<vmem>>, vector<1x32x128xf32>
    %31 = vector.shape_cast %30 : vector<1x32x128xf32> to vector<32x128xf32>
    %32 = arith.mulf %29, %31 : vector<32x128xf32>
    %33 = arith.addf %28, %32 : vector<32x128xf32>
    %c112_i32_19 = arith.constant 112 : i32
    %34 = tpu.dynamic_rotate %25 by %c112_i32_19 dim 1 : vector<32x128xf32>, i32 -> vector<32x128xf32>
    %c7 = arith.constant 7 : index
    %c0_20 = arith.constant 0 : index
    %c0_21 = arith.constant 0 : index
    %35 = vector.load %arg1[%c7, %c0_20, %c0_21] : memref<25x32x128xf32, #tpu.memory_space<vmem>>, vector<1x32x128xf32>
    %36 = vector.shape_cast %35 : vector<1x32x128xf32> to vector<32x128xf32>
    %37 = arith.mulf %34, %36 : vector<32x128xf32>
    %38 = arith.addf %33, %37 : vector<32x128xf32>
    %c104_i32_22 = arith.constant 104 : i32
    %39 = tpu.dynamic_rotate %25 by %c104_i32_22 dim 1 : vector<32x128xf32>, i32 -> vector<32x128xf32>
    %c8 = arith.constant 8 : index
    %c0_23 = arith.constant 0 : index
    %c0_24 = arith.constant 0 : index
    %40 = vector.load %arg1[%c8, %c0_23, %c0_24] : memref<25x32x128xf32, #tpu.memory_space<vmem>>, vector<1x32x128xf32>
    %41 = vector.shape_cast %40 : vector<1x32x128xf32> to vector<32x128xf32>
    %42 = arith.mulf %39, %41 : vector<32x128xf32>
    %43 = arith.addf %38, %42 : vector<32x128xf32>
    %c96_i32_25 = arith.constant 96 : i32
    %44 = tpu.dynamic_rotate %25 by %c96_i32_25 dim 1 : vector<32x128xf32>, i32 -> vector<32x128xf32>
    %c9 = arith.constant 9 : index
    %c0_26 = arith.constant 0 : index
    %c0_27 = arith.constant 0 : index
    %45 = vector.load %arg1[%c9, %c0_26, %c0_27] : memref<25x32x128xf32, #tpu.memory_space<vmem>>, vector<1x32x128xf32>
    %46 = vector.shape_cast %45 : vector<1x32x128xf32> to vector<32x128xf32>
    %47 = arith.mulf %44, %46 : vector<32x128xf32>
    %48 = arith.addf %43, %47 : vector<32x128xf32>
    %c2_28 = arith.constant 2 : index
    %c0_29 = arith.constant 0 : index
    %49 = vector.load %arg0[%c2_28, %c0_29] : memref<40x128xf32, #tpu.memory_space<vmem>>, vector<32x128xf32>
    %c10 = arith.constant 10 : index
    %c0_30 = arith.constant 0 : index
    %c0_31 = arith.constant 0 : index
    %50 = vector.load %arg1[%c10, %c0_30, %c0_31] : memref<25x32x128xf32, #tpu.memory_space<vmem>>, vector<1x32x128xf32>
    %51 = vector.shape_cast %50 : vector<1x32x128xf32> to vector<32x128xf32>
    %52 = arith.mulf %49, %51 : vector<32x128xf32>
    %c120_i32_32 = arith.constant 120 : i32
    %53 = tpu.dynamic_rotate %49 by %c120_i32_32 dim 1 : vector<32x128xf32>, i32 -> vector<32x128xf32>
    %c11 = arith.constant 11 : index
    %c0_33 = arith.constant 0 : index
    %c0_34 = arith.constant 0 : index
    %54 = vector.load %arg1[%c11, %c0_33, %c0_34] : memref<25x32x128xf32, #tpu.memory_space<vmem>>, vector<1x32x128xf32>
    %55 = vector.shape_cast %54 : vector<1x32x128xf32> to vector<32x128xf32>
    %56 = arith.mulf %53, %55 : vector<32x128xf32>
    %57 = arith.addf %52, %56 : vector<32x128xf32>
    %c112_i32_35 = arith.constant 112 : i32
    %58 = tpu.dynamic_rotate %49 by %c112_i32_35 dim 1 : vector<32x128xf32>, i32 -> vector<32x128xf32>
    %c12 = arith.constant 12 : index
    %c0_36 = arith.constant 0 : index
    %c0_37 = arith.constant 0 : index
    %59 = vector.load %arg1[%c12, %c0_36, %c0_37] : memref<25x32x128xf32, #tpu.memory_space<vmem>>, vector<1x32x128xf32>
    %60 = vector.shape_cast %59 : vector<1x32x128xf32> to vector<32x128xf32>
    %61 = arith.mulf %58, %60 : vector<32x128xf32>
    %62 = arith.addf %57, %61 : vector<32x128xf32>
    %c104_i32_38 = arith.constant 104 : i32
    %63 = tpu.dynamic_rotate %49 by %c104_i32_38 dim 1 : vector<32x128xf32>, i32 -> vector<32x128xf32>
    %c13 = arith.constant 13 : index
    %c0_39 = arith.constant 0 : index
    %c0_40 = arith.constant 0 : index
    %64 = vector.load %arg1[%c13, %c0_39, %c0_40] : memref<25x32x128xf32, #tpu.memory_space<vmem>>, vector<1x32x128xf32>
    %65 = vector.shape_cast %64 : vector<1x32x128xf32> to vector<32x128xf32>
    %66 = arith.mulf %63, %65 : vector<32x128xf32>
    %67 = arith.addf %62, %66 : vector<32x128xf32>
    %c96_i32_41 = arith.constant 96 : i32
    %68 = tpu.dynamic_rotate %49 by %c96_i32_41 dim 1 : vector<32x128xf32>, i32 -> vector<32x128xf32>
    %c14 = arith.constant 14 : index
    %c0_42 = arith.constant 0 : index
    %c0_43 = arith.constant 0 : index
    %69 = vector.load %arg1[%c14, %c0_42, %c0_43] : memref<25x32x128xf32, #tpu.memory_space<vmem>>, vector<1x32x128xf32>
    %70 = vector.shape_cast %69 : vector<1x32x128xf32> to vector<32x128xf32>
    %71 = arith.mulf %68, %70 : vector<32x128xf32>
    %72 = arith.addf %67, %71 : vector<32x128xf32>
    %c3_44 = arith.constant 3 : index
    %c0_45 = arith.constant 0 : index
    %73 = vector.load %arg0[%c3_44, %c0_45] : memref<40x128xf32, #tpu.memory_space<vmem>>, vector<32x128xf32>
    %c15 = arith.constant 15 : index
    %c0_46 = arith.constant 0 : index
    %c0_47 = arith.constant 0 : index
    %74 = vector.load %arg1[%c15, %c0_46, %c0_47] : memref<25x32x128xf32, #tpu.memory_space<vmem>>, vector<1x32x128xf32>
    %75 = vector.shape_cast %74 : vector<1x32x128xf32> to vector<32x128xf32>
    %76 = arith.mulf %73, %75 : vector<32x128xf32>
    %c120_i32_48 = arith.constant 120 : i32
    %77 = tpu.dynamic_rotate %73 by %c120_i32_48 dim 1 : vector<32x128xf32>, i32 -> vector<32x128xf32>
    %c16 = arith.constant 16 : index
    %c0_49 = arith.constant 0 : index
    %c0_50 = arith.constant 0 : index
    %78 = vector.load %arg1[%c16, %c0_49, %c0_50] : memref<25x32x128xf32, #tpu.memory_space<vmem>>, vector<1x32x128xf32>
    %79 = vector.shape_cast %78 : vector<1x32x128xf32> to vector<32x128xf32>
    %80 = arith.mulf %77, %79 : vector<32x128xf32>
    %81 = arith.addf %76, %80 : vector<32x128xf32>
    %c112_i32_51 = arith.constant 112 : i32
    %82 = tpu.dynamic_rotate %73 by %c112_i32_51 dim 1 : vector<32x128xf32>, i32 -> vector<32x128xf32>
    %c17 = arith.constant 17 : index
    %c0_52 = arith.constant 0 : index
    %c0_53 = arith.constant 0 : index
    %83 = vector.load %arg1[%c17, %c0_52, %c0_53] : memref<25x32x128xf32, #tpu.memory_space<vmem>>, vector<1x32x128xf32>
    %84 = vector.shape_cast %83 : vector<1x32x128xf32> to vector<32x128xf32>
    %85 = arith.mulf %82, %84 : vector<32x128xf32>
    %86 = arith.addf %81, %85 : vector<32x128xf32>
    %c104_i32_54 = arith.constant 104 : i32
    %87 = tpu.dynamic_rotate %73 by %c104_i32_54 dim 1 : vector<32x128xf32>, i32 -> vector<32x128xf32>
    %c18 = arith.constant 18 : index
    %c0_55 = arith.constant 0 : index
    %c0_56 = arith.constant 0 : index
    %88 = vector.load %arg1[%c18, %c0_55, %c0_56] : memref<25x32x128xf32, #tpu.memory_space<vmem>>, vector<1x32x128xf32>
    %89 = vector.shape_cast %88 : vector<1x32x128xf32> to vector<32x128xf32>
    %90 = arith.mulf %87, %89 : vector<32x128xf32>
    %91 = arith.addf %86, %90 : vector<32x128xf32>
    %c96_i32_57 = arith.constant 96 : i32
    %92 = tpu.dynamic_rotate %73 by %c96_i32_57 dim 1 : vector<32x128xf32>, i32 -> vector<32x128xf32>
    %c19 = arith.constant 19 : index
    %c0_58 = arith.constant 0 : index
    %c0_59 = arith.constant 0 : index
    %93 = vector.load %arg1[%c19, %c0_58, %c0_59] : memref<25x32x128xf32, #tpu.memory_space<vmem>>, vector<1x32x128xf32>
    %94 = vector.shape_cast %93 : vector<1x32x128xf32> to vector<32x128xf32>
    %95 = arith.mulf %92, %94 : vector<32x128xf32>
    %96 = arith.addf %91, %95 : vector<32x128xf32>
    %c4_60 = arith.constant 4 : index
    %c0_61 = arith.constant 0 : index
    %97 = vector.load %arg0[%c4_60, %c0_61] : memref<40x128xf32, #tpu.memory_space<vmem>>, vector<32x128xf32>
    %c20 = arith.constant 20 : index
    %c0_62 = arith.constant 0 : index
    %c0_63 = arith.constant 0 : index
    %98 = vector.load %arg1[%c20, %c0_62, %c0_63] : memref<25x32x128xf32, #tpu.memory_space<vmem>>, vector<1x32x128xf32>
    %99 = vector.shape_cast %98 : vector<1x32x128xf32> to vector<32x128xf32>
    %100 = arith.mulf %97, %99 : vector<32x128xf32>
    %c120_i32_64 = arith.constant 120 : i32
    %101 = tpu.dynamic_rotate %97 by %c120_i32_64 dim 1 : vector<32x128xf32>, i32 -> vector<32x128xf32>
    %c21 = arith.constant 21 : index
    %c0_65 = arith.constant 0 : index
    %c0_66 = arith.constant 0 : index
    %102 = vector.load %arg1[%c21, %c0_65, %c0_66] : memref<25x32x128xf32, #tpu.memory_space<vmem>>, vector<1x32x128xf32>
    %103 = vector.shape_cast %102 : vector<1x32x128xf32> to vector<32x128xf32>
    %104 = arith.mulf %101, %103 : vector<32x128xf32>
    %105 = arith.addf %100, %104 : vector<32x128xf32>
    %c112_i32_67 = arith.constant 112 : i32
    %106 = tpu.dynamic_rotate %97 by %c112_i32_67 dim 1 : vector<32x128xf32>, i32 -> vector<32x128xf32>
    %c22 = arith.constant 22 : index
    %c0_68 = arith.constant 0 : index
    %c0_69 = arith.constant 0 : index
    %107 = vector.load %arg1[%c22, %c0_68, %c0_69] : memref<25x32x128xf32, #tpu.memory_space<vmem>>, vector<1x32x128xf32>
    %108 = vector.shape_cast %107 : vector<1x32x128xf32> to vector<32x128xf32>
    %109 = arith.mulf %106, %108 : vector<32x128xf32>
    %110 = arith.addf %105, %109 : vector<32x128xf32>
    %c104_i32_70 = arith.constant 104 : i32
    %111 = tpu.dynamic_rotate %97 by %c104_i32_70 dim 1 : vector<32x128xf32>, i32 -> vector<32x128xf32>
    %c23 = arith.constant 23 : index
    %c0_71 = arith.constant 0 : index
    %c0_72 = arith.constant 0 : index
    %112 = vector.load %arg1[%c23, %c0_71, %c0_72] : memref<25x32x128xf32, #tpu.memory_space<vmem>>, vector<1x32x128xf32>
    %113 = vector.shape_cast %112 : vector<1x32x128xf32> to vector<32x128xf32>
    %114 = arith.mulf %111, %113 : vector<32x128xf32>
    %115 = arith.addf %110, %114 : vector<32x128xf32>
    %c96_i32_73 = arith.constant 96 : i32
    %116 = tpu.dynamic_rotate %97 by %c96_i32_73 dim 1 : vector<32x128xf32>, i32 -> vector<32x128xf32>
    %c24 = arith.constant 24 : index
    %c0_74 = arith.constant 0 : index
    %c0_75 = arith.constant 0 : index
    %117 = vector.load %arg1[%c24, %c0_74, %c0_75] : memref<25x32x128xf32, #tpu.memory_space<vmem>>, vector<1x32x128xf32>
    %118 = vector.shape_cast %117 : vector<1x32x128xf32> to vector<32x128xf32>
    %119 = arith.mulf %116, %118 : vector<32x128xf32>
    %120 = arith.addf %115, %119 : vector<32x128xf32>
    %121 = arith.addf %24, %48 : vector<32x128xf32>
    %122 = arith.addf %72, %96 : vector<32x128xf32>
    %123 = arith.addf %121, %122 : vector<32x128xf32>
    %124 = arith.addf %123, %120 : vector<32x128xf32>
    %c0_76 = arith.constant 0 : index
    %c0_77 = arith.constant 0 : index
    %125 = vector.load %arg9[%c0_76, %c0_77] : memref<40x128xf32, #tpu.memory_space<vmem>>, vector<32x128xf32>
    tpu.vector_store %arg9[%c0_76, %c0_77], %124 {strides = array<i32>} : memref<40x128xf32, #tpu.memory_space<vmem>>, vector<32x128xf32>,
    %c32 = arith.constant 32 : index
    %c0_78 = arith.constant 0 : index
    %126 = vector.load %arg9[%c32, %c0_78] : memref<40x128xf32, #tpu.memory_space<vmem>>, vector<8x128xf32>
    tpu.vector_store %arg9[%c32, %c0_78], %0 {strides = array<i32>} : memref<40x128xf32, #tpu.memory_space<vmem>>, vector<8x128xf32>,
    %c0_79 = arith.constant 0 : index
    %c0_80 = arith.constant 0 : index
    %127 = vector.load %arg9[%c0_79, %c0_80] : memref<40x128xf32, #tpu.memory_space<vmem>>, vector<32x128xf32>
    %c1_81 = arith.constant 1 : index
    %c0_82 = arith.constant 0 : index
    %128 = vector.load %arg9[%c1_81, %c0_82] : memref<40x128xf32, #tpu.memory_space<vmem>>, vector<32x128xf32>
    %c2_83 = arith.constant 2 : index
    %c0_84 = arith.constant 0 : index
    %129 = vector.load %arg9[%c2_83, %c0_84] : memref<40x128xf32, #tpu.memory_space<vmem>>, vector<32x128xf32>
    %130 = tpu.concatenate %127, %128, %129 in 1 : vector<32x128xf32>, vector<32x128xf32>, vector<32x128xf32> -> vector<32x384xf32>
    %c0_85 = arith.constant 0 : index
    %c0_86 = arith.constant 0 : index
    %131 = vector.load %arg2[%c0_85, %c0_86] : memref<384x128xf32, #tpu.memory_space<vmem>>, vector<384x128xf32>
    %cst_87 = arith.constant dense<0.000000e+00> : vector<32x128xf32>
    %132 = tpu.matmul %130, %131, %cst_87 {dimension_numbers = #tpu.dot_dimension_numbers<[1], [0], [0], [1], [0, 0, 1, 1], [], []>} : vector<32x384xf32>, vector<384x128xf32>, vector<32x128xf32> -> vector<32x128xf32>
    %c0_88 = arith.constant 0 : index
    %c0_89 = arith.constant 0 : index
    %133 = vector.load %arg3[%c0_88, %c0_89] : memref<1x128xf32, #tpu.memory_space<vmem>>, vector<1x128xf32>
    %134 = vector.broadcast %133 : vector<1x128xf32> to vector<32x128xf32>
    %135 = arith.addf %132, %134 : vector<32x128xf32>
    %cst_90 = arith.constant 0.000000e+00 : f32
    %136 = vector.broadcast %cst_90 : f32 to vector<32x128xf32>
    %137 = arith.maximumf %135, %136 : vector<32x128xf32>
    %c0_91 = arith.constant 0 : index
    %c0_92 = arith.constant 0 : index
    %138 = vector.load %arg10[%c0_91, %c0_92] : memref<40x128xf32, #tpu.memory_space<vmem>>, vector<32x128xf32>
    tpu.vector_store %arg10[%c0_91, %c0_92], %137 {strides = array<i32>} : memref<40x128xf32, #tpu.memory_space<vmem>>, vector<32x128xf32>,
    %c32_93 = arith.constant 32 : index
    %c0_94 = arith.constant 0 : index
    %139 = vector.load %arg10[%c32_93, %c0_94] : memref<40x128xf32, #tpu.memory_space<vmem>>, vector<8x128xf32>
    tpu.vector_store %arg10[%c32_93, %c0_94], %0 {strides = array<i32>} : memref<40x128xf32, #tpu.memory_space<vmem>>, vector<8x128xf32>,
    %c0_95 = arith.constant 0 : index
    %c0_96 = arith.constant 0 : index
    %140 = vector.load %arg10[%c0_95, %c0_96] : memref<40x128xf32, #tpu.memory_space<vmem>>, vector<32x128xf32>
    %c1_97 = arith.constant 1 : index
    %c0_98 = arith.constant 0 : index
    %141 = vector.load %arg10[%c1_97, %c0_98] : memref<40x128xf32, #tpu.memory_space<vmem>>, vector<32x128xf32>
    %c2_99 = arith.constant 2 : index
    %c0_100 = arith.constant 0 : index
    %142 = vector.load %arg10[%c2_99, %c0_100] : memref<40x128xf32, #tpu.memory_space<vmem>>, vector<32x128xf32>
    %143 = tpu.concatenate %140, %141, %142 in 1 : vector<32x128xf32>, vector<32x128xf32>, vector<32x128xf32> -> vector<32x384xf32>
    %c0_101 = arith.constant 0 : index
    %c0_102 = arith.constant 0 : index
    %144 = vector.load %arg4[%c0_101, %c0_102] : memref<384x128xf32, #tpu.memory_space<vmem>>, vector<384x128xf32>
    %cst_103 = arith.constant dense<0.000000e+00> : vector<32x128xf32>
    %145 = tpu.matmul %143, %144, %cst_103 {dimension_numbers = #tpu.dot_dimension_numbers<[1], [0], [0], [1], [0, 0, 1, 1], [], []>} : vector<32x384xf32>, vector<384x128xf32>, vector<32x128xf32> -> vector<32x128xf32>
    %c0_104 = arith.constant 0 : index
    %c0_105 = arith.constant 0 : index
    %146 = vector.load %arg5[%c0_104, %c0_105] : memref<1x128xf32, #tpu.memory_space<vmem>>, vector<1x128xf32>
    %147 = vector.broadcast %146 : vector<1x128xf32> to vector<32x128xf32>
    %148 = arith.addf %145, %147 : vector<32x128xf32>
    %cst_106 = arith.constant 0.000000e+00 : f32
    %149 = vector.broadcast %cst_106 : f32 to vector<32x128xf32>
    %150 = arith.maximumf %148, %149 : vector<32x128xf32>
    %c0_107 = arith.constant 0 : index
    %c0_108 = arith.constant 0 : index
    %151 = vector.load %arg6[%c0_107, %c0_108] : memref<128x128xf32, #tpu.memory_space<vmem>>, vector<128x128xf32>
    %cst_109 = arith.constant dense<0.000000e+00> : vector<32x128xf32>
    %152 = tpu.matmul %150, %151, %cst_109 {dimension_numbers = #tpu.dot_dimension_numbers<[1], [0], [0], [1], [0, 0, 1, 1], [], []>} : vector<32x128xf32>, vector<128x128xf32>, vector<32x128xf32> -> vector<32x128xf32>
    %c0_110 = arith.constant 0 : index
    %c0_111 = arith.constant 0 : index
    %153 = memref.load %arg7[%c0_110, %c0_111] : memref<1x1xf32, #tpu.memory_space<smem>>
    %154 = vector.broadcast %153 : f32 to vector<32x128xf32>
    %155 = arith.addf %152, %154 : vector<32x128xf32>
    %c0_112 = arith.constant 0 : index
    %c0_113 = arith.constant 0 : index
    %156 = vector.load %arg8[%c0_112, %c0_113] : memref<32x128xf32, #tpu.memory_space<vmem>>, vector<32x128xf32>
    tpu.vector_store %arg8[%c0_112, %c0_113], %155 {strides = array<i32>} : memref<32x128xf32, #tpu.memory_space<vmem>>, vector<32x128xf32>,
    return
  }
}

</mosaic_0001>

<llo_original>
// kernel: tpu_custom_call.1
$region0: #{tpu_custom_call.1}
  #allocation0 [shape = 'u32[]', space=smem, size = 0x4, offset = 0x4, fixed_abs, tag = 'smem constant byte address 0x4 - core index']
  #allocation1 [shape = 'u32[144,128]{1,0:T(1,128)}', space=vmem, size = 0x12000, scoped, tag = 'internal scratch']
  #allocation2 [shape = 'f32[40,128]{1,0:T(8,128)}', space=vmem, size = 0x5000, scoped, tag = 'scratch operand']
  #allocation3 [shape = 'f32[1,1]{1,0:T(1,128)S(6)}', space=smem, size = 0x200, scoped, tag = 'scoped memory for tpu_custom_call.1']
  %s0 = inlined_call_operand.hbm [shape: f32[40,128], index: 0, kind: input, shape index: {}]
  %s1 = inlined_call_operand.hbm [shape: f32[25,32,128], index: 1, kind: input, shape index: {}]
  %s2 = inlined_call_operand.hbm [shape: f32[384,128], index: 2, kind: input, shape index: {}]
  %s3 = inlined_call_operand.vmem [shape: f32[1,128], index: 3, kind: input, shape index: {}]
  %s4 = inlined_call_operand.hbm [shape: f32[384,128], index: 4, kind: input, shape index: {}]
  %s5 = inlined_call_operand.vmem [shape: f32[1,128], index: 5, kind: input, shape index: {}]
  %s6 = inlined_call_operand.hbm [shape: f32[128,128], index: 6, kind: input, shape index: {}]
  %s7 = inlined_call_operand.<no memory space> [shape: f32[1,1], index: 7, kind: input, shape index: {}]
  %s8 = inlined_call_operand.hbm [shape: f32[32,128], index: 8, kind: output, shape index: {0}]
  %s9 = inlined_call_operand.hbm [shape: f32[40,128], index: 9, kind: output, shape index: {1}]
  %10 = xla_tuple %s8, %s9
  %s11 = sld [smem:[#allocation0]]
  $region70: #{tpu_custom_call.1} parent=0
    _
  %s13 = ssub.s32 1, %s11
  %s14 = scalar_select 0, %s13, %s11
  %15 = sst [smem:[#allocation3]] %s7
  $region1: #{tpu_custom_call.1} parent=0
    #allocation4 [shape = 'u8[20480]{0}', space=vmem, size = 0x5000, scoped, tag = 'input window, operand 0, single buffered']
    #allocation5 [shape = 's32[1]{0}', space=sflag, size = 0x4, scoped, tag = 'scoped memory for tpu_custom_call.1']
    #allocation6 [shape = 's32[1]{0}', space=sflag, size = 0x4, scoped, tag = 'scoped memory for tpu_custom_call.1']
    #allocation7 [shape = 'u8[409600]{0}', space=vmem, size = 0x64000, scoped, tag = 'input window, operand 1, single buffered']
    #allocation8 [shape = 's32[1]{0}', space=sflag, size = 0x4, scoped, tag = 'scoped memory for tpu_custom_call.1']
    #allocation9 [shape = 'u8[196608]{0}', space=vmem, size = 0x30000, scoped, tag = 'input window, operand 2, single buffered']
    #allocation10 [shape = 'u8[196608]{0}', space=vmem, size = 0x30000, scoped, tag = 'input window, operand 4, single buffered']
    #allocation11 [shape = 's32[1]{0}', space=sflag, size = 0x4, scoped, tag = 'scoped memory for tpu_custom_call.1']
    #allocation12 [shape = 'u8[65536]{0}', space=vmem, size = 0x10000, scoped, tag = 'input window, operand 6, single buffered']
    #allocation13 [shape = 'u8[16384]{0}', space=vmem, size = 0x4000, scoped, tag = 'output window, operand 0, single buffered']
    #allocation14 [shape = 'u8[20480]{0}', space=vmem, size = 0x5000, scoped, tag = 'output window, operand 1, single buffered']
    #allocation15 [shape = 's32[1]{0}', space=sflag, size = 0x4, scoped, tag = 'scoped memory for tpu_custom_call.1']
    %16 = vsyncpa [#allocation5], 0
    %17 = vsyncpa [#allocation8], 0
    %18 = vsyncpa [#allocation11], 0
    %19 = vsyncpa [#allocation6], 0
    %20 = vsyncpa [#allocation15], 0
    // Predicated region
    $region2: #{tpu_custom_call.1} parent=1 // pred_check
      _
    $region3: #{tpu_custom_call.1} parent=1 // pred_check_branch
      %22 = sbr.rel (0) target = $region5
    $region4: #{tpu_custom_call.1} parent=1 // pred_region
      %s24 = ssub.s32 640, 640
      %25 = vsyncadd [#allocation5], %s24
      %s26 = sshll.u32 [#allocation4], 4
      %s27 = int_to_ptr.vmem [resolvable:$true] %s26
      %32 = dma.hbm_to_vmem [thread:$0]  %s0, 640, %s27, [#allocation5], 128, 128, 8
    $region5: #{tpu_custom_call.1} parent=1 // pred_fallthru
      _
    // Predicated region
    $region6: #{tpu_custom_call.1} parent=1 // pred_check
      _
    $region7: #{tpu_custom_call.1} parent=1 // pred_check_branch
      %34 = sbr.rel (0) target = $region9
    $region8: #{tpu_custom_call.1} parent=1 // pred_region
      %s36 = ssub.s32 12800, 12800
      %37 = vsyncadd [#allocation8], %s36
      %s38 = sshll.u32 [#allocation7], 4
      %s39 = int_to_ptr.vmem [resolvable:$true] %s38
      %44 = dma.hbm_to_vmem [thread:$0]  %s1, 12800, %s39, [#allocation8], 128, 128, 8
    $region9: #{tpu_custom_call.1} parent=1 // pred_fallthru
      _
    // Predicated region
    $region10: #{tpu_custom_call.1} parent=1 // pred_check
      _
    $region11: #{tpu_custom_call.1} parent=1 // pred_check_branch
      %46 = sbr.rel (0) target = $region13
    $region12: #{tpu_custom_call.1} parent=1 // pred_region
      %s48 = ssub.s32 6144, 6144
      %49 = vsyncadd [#allocation8], %s48
      %s50 = sshll.u32 [#allocation9], 4
      %s51 = int_to_ptr.vmem [resolvable:$true] %s50
      %56 = dma.hbm_to_vmem [thread:$0]  %s2, 6144, %s51, [#allocation8], 128, 128, 8
    $region13: #{tpu_custom_call.1} parent=1 // pred_fallthru
      _
    // Predicated region
    $region14: #{tpu_custom_call.1} parent=1 // pred_check
      _
    $region15: #{tpu_custom_call.1} parent=1 // pred_check_branch
      %58 = sbr.rel (0) target = $region17
    $region16: #{tpu_custom_call.1} parent=1 // pred_region
      _
    $region17: #{tpu_custom_call.1} parent=1 // pred_fallthru
      _
    // Predicated region
    $region18: #{tpu_custom_call.1} parent=1 // pred_check
      _
    $region19: #{tpu_custom_call.1} parent=1 // pred_check_branch
      %60 = sbr.rel (0) target = $region21
    $region20: #{tpu_custom_call.1} parent=1 // pred_region
      %s62 = ssub.s32 6144, 6144
      %63 = vsyncadd [#allocation11], %s62
      %s64 = sshll.u32 [#allocation10], 4
      %s65 = int_to_ptr.vmem [resolvable:$true] %s64
      %70 = dma.hbm_to_vmem [thread:$0]  %s4, 6144, %s65, [#allocation11], 128, 128, 8
    $region21: #{tpu_custom_call.1} parent=1 // pred_fallthru
      _
    // Predicated region
    $region22: #{tpu_custom_call.1} parent=1 // pred_check
      _
    $region23: #{tpu_custom_call.1} parent=1 // pred_check_branch
      %72 = sbr.rel (0) target = $region25
    $region24: #{tpu_custom_call.1} parent=1 // pred_region
      _
    $region25: #{tpu_custom_call.1} parent=1 // pred_fallthru
      _
    // Predicated region
    $region26: #{tpu_custom_call.1} parent=1 // pred_check
      _
    $region27: #{tpu_custom_call.1} parent=1 // pred_check_branch
      %74 = sbr.rel (0) target = $region29
    $region28: #{tpu_custom_call.1} parent=1 // pred_region
      %s76 = ssub.s32 2048, 2048
      %77 = vsyncadd [#allocation11], %s76
      %s78 = sshll.u32 [#allocation12], 4
      %s79 = int_to_ptr.vmem [resolvable:$true] %s78
      %84 = dma.hbm_to_vmem [thread:$0]  %s6, 2048, %s79, [#allocation11], 128, 128, 8
    $region29: #{tpu_custom_call.1} parent=1 // pred_fallthru
      _
    // Predicated region
    $region30: #{tpu_custom_call.1} parent=1 // pred_check
      _
    $region31: #{tpu_custom_call.1} parent=1 // pred_check_branch
      %86 = sbr.rel (0) target = $region33
    $region32: #{tpu_custom_call.1} parent=1 // pred_region
      _
    $region33: #{tpu_custom_call.1} parent=1 // pred_fallthru
      _
    // Predicated region
    $region34: #{tpu_custom_call.1} parent=1 // pred_check
      _
    $region35: #{tpu_custom_call.1} parent=1 // pred_check_branch
      %88 = sbr.rel (0) target = $region37
    $region36: #{tpu_custom_call.1} parent=1 // pred_region
      %89 = dma.done [#allocation5], 640
    $region37: #{tpu_custom_call.1} parent=1 // pred_fallthru
      _
    // Predicated region
    $region38: #{tpu_custom_call.1} parent=1 // pred_check
      _
    $region39: #{tpu_custom_call.1} parent=1 // pred_check_branch
      %91 = sbr.rel (0) target = $region41
    $region40: #{tpu_custom_call.1} parent=1 // pred_region
      %92 = dma.done [#allocation8], 12800
    $region41: #{tpu_custom_call.1} parent=1 // pred_fallthru
      _
    // Predicated region
    $region42: #{tpu_custom_call.1} parent=1 // pred_check
      _
    $region43: #{tpu_custom_call.1} parent=1 // pred_check_branch
      %94 = sbr.rel (0) target = $region45
    $region44: #{tpu_custom_call.1} parent=1 // pred_region
      %95 = dma.done [#allocation8], 6144
    $region45: #{tpu_custom_call.1} parent=1 // pred_fallthru
      _
    // Predicated region
    $region46: #{tpu_custom_call.1} parent=1 // pred_check
      _
    $region47: #{tpu_custom_call.1} parent=1 // pred_check_branch
      %97 = sbr.rel (0) target = $region49
    $region48: #{tpu_custom_call.1} parent=1 // pred_region
      %98 = dma.done [#allocation11], 6144
    $region49: #{tpu_custom_call.1} parent=1 // pred_fallthru
      _
    // Predicated region
    $region50: #{tpu_custom_call.1} parent=1 // pred_check
      _
    $region51: #{tpu_custom_call.1} parent=1 // pred_check_branch
      %100 = sbr.rel (0) target = $region53
    $region52: #{tpu_custom_call.1} parent=1 // pred_region
      %101 = dma.done [#allocation11], 2048
    $region53: #{tpu_custom_call.1} parent=1 // pred_fallthru
      _
    %v102 = vld [vmem:[#allocation4] sm:$0xff]
    %v103 = vld [vmem:[#allocation4 + $0x8] sm:$0xff]
    %v104 = vld [vmem:[#allocation4 + $0x10] sm:$0xff]
    %v105 = vld [vmem:[#allocation4 + $0x18] sm:$0xff]
    %v106 = vld [vmem:[#allocation7] sm:$0xff]
    %v107 = vld [vmem:[#allocation7 + $0x8] sm:$0xff]
    %v108 = vld [vmem:[#allocation7 + $0x10] sm:$0xff]
    %v109 = vld [vmem:[#allocation7 + $0x18] sm:$0xff]
    %v110 = vmul.f32 %v102, %v106
    %v111 = vmul.f32 %v103, %v107
    %v112 = vmul.f32 %v104, %v108
    %v113 = vmul.f32 %v105, %v109
    %114 = vrot.lane.b32.xlu0 %v102, 120
    %v115 = vpop.permute.xlu0 %114
    %116 = vrot.lane.b32.xlu0 %v103, 120
    %v117 = vpop.permute.xlu0 %116
    %118 = vrot.lane.b32.xlu0 %v104, 120
    %v119 = vpop.permute.xlu0 %118
    %120 = vrot.lane.b32.xlu0 %v105, 120
    %v121 = vpop.permute.xlu0 %120
    %s122 = scalar_lea.vmem [#allocation7], 32
    %v123 = vld [vmem:[%s122] sm:$0xff]
    %v124 = vld [vmem:[%s122 + $0x8] sm:$0xff]
    %v125 = vld [vmem:[%s122 + $0x10] sm:$0xff]
    %v126 = vld [vmem:[%s122 + $0x18] sm:$0xff]
    %v127 = vmul.f32 %v115, %v123
    %v128 = vmul.f32 %v117, %v124
    %v129 = vmul.f32 %v119, %v125
    %v130 = vmul.f32 %v121, %v126
    %v131 = vadd.f32 %v110, %v127
    %v132 = vadd.f32 %v111, %v128
    %v133 = vadd.f32 %v112, %v129
    %v134 = vadd.f32 %v113, %v130
    %135 = vrot.lane.b32.xlu0 %v102, 112
    %v136 = vpop.permute.xlu0 %135
    %137 = vrot.lane.b32.xlu0 %v103, 112
    %v138 = vpop.permute.xlu0 %137
    %139 = vrot.lane.b32.xlu0 %v104, 112
    %v140 = vpop.permute.xlu0 %139
    %141 = vrot.lane.b32.xlu0 %v105, 112
    %v142 = vpop.permute.xlu0 %141
    %s143 = scalar_lea.vmem [#allocation7], 64
    %v144 = vld [vmem:[%s143] sm:$0xff]
    %v145 = vld [vmem:[%s143 + $0x8] sm:$0xff]
    %v146 = vld [vmem:[%s143 + $0x10] sm:$0xff]
    %v147 = vld [vmem:[%s143 + $0x18] sm:$0xff]
    %v148 = vmul.f32 %v136, %v144
    %v149 = vmul.f32 %v138, %v145
    %v150 = vmul.f32 %v140, %v146
    %v151 = vmul.f32 %v142, %v147
    %v152 = vadd.f32 %v131, %v148
    %v153 = vadd.f32 %v132, %v149
    %v154 = vadd.f32 %v133, %v150
    %v155 = vadd.f32 %v134, %v151
    %156 = vrot.lane.b32.xlu0 %v102, 104
    %v157 = vpop.permute.xlu0 %156
    %158 = vrot.lane.b32.xlu0 %v103, 104
    %v159 = vpop.permute.xlu0 %158
    %160 = vrot.lane.b32.xlu0 %v104, 104
    %v161 = vpop.permute.xlu0 %160
    %162 = vrot.lane.b32.xlu0 %v105, 104
    %v163 = vpop.permute.xlu0 %162
    %s164 = scalar_lea.vmem [#allocation7], 96
    %v165 = vld [vmem:[%s164] sm:$0xff]
    %v166 = vld [vmem:[%s164 + $0x8] sm:$0xff]
    %v167 = vld [vmem:[%s164 + $0x10] sm:$0xff]
    %v168 = vld [vmem:[%s164 + $0x18] sm:$0xff]
    %v169 = vmul.f32 %v157, %v165
    %v170 = vmul.f32 %v159, %v166
    %v171 = vmul.f32 %v161, %v167
    %v172 = vmul.f32 %v163, %v168
    %v173 = vadd.f32 %v152, %v169
    %v174 = vadd.f32 %v153, %v170
    %v175 = vadd.f32 %v154, %v171
    %v176 = vadd.f32 %v155, %v172
    %177 = vrot.lane.b32.xlu0 %v102, 96
    %v178 = vpop.permute.xlu0 %177
    %179 = vrot.lane.b32.xlu0 %v103, 96
    %v180 = vpop.permute.xlu0 %179
    %181 = vrot.lane.b32.xlu0 %v104, 96
    %v182 = vpop.permute.xlu0 %181
    %183 = vrot.lane.b32.xlu0 %v105, 96
    %v184 = vpop.permute.xlu0 %183
    %s185 = scalar_lea.vmem [#allocation7], 128
    %v186 = vld [vmem:[%s185] sm:$0xff]
    %v187 = vld [vmem:[%s185 + $0x8] sm:$0xff]
    %v188 = vld [vmem:[%s185 + $0x10] sm:$0xff]
    %v189 = vld [vmem:[%s185 + $0x18] sm:$0xff]
    %v190 = vmul.f32 %v178, %v186
    %v191 = vmul.f32 %v180, %v187
    %v192 = vmul.f32 %v182, %v188
    %v193 = vmul.f32 %v184, %v189
    %v194 = vadd.f32 %v173, %v190
    %v195 = vadd.f32 %v174, %v191
    %v196 = vadd.f32 %v175, %v192
    %v197 = vadd.f32 %v176, %v193
    %v198 = vld [vmem:[#allocation4 + $0x1] sm:$0xff]
    %v199 = vld [vmem:[#allocation4 + $0x9] sm:$0xff]
    %v200 = vld [vmem:[#allocation4 + $0x11] sm:$0xff]
    %v201 = vld [vmem:[#allocation4 + $0x19] sm:$0xff]
    %s202 = scalar_lea.vmem [#allocation7], 160
    %v203 = vld [vmem:[%s202] sm:$0xff]
    %v204 = vld [vmem:[%s202 + $0x8] sm:$0xff]
    %v205 = vld [vmem:[%s202 + $0x10] sm:$0xff]
    %v206 = vld [vmem:[%s202 + $0x18] sm:$0xff]
    %v207 = vmul.f32 %v198, %v203
    %v208 = vmul.f32 %v199, %v204
    %v209 = vmul.f32 %v200, %v205
    %v210 = vmul.f32 %v201, %v206
    %211 = vrot.lane.b32.xlu0 %v198, 120
    %v212 = vpop.permute.xlu0 %211
    %213 = vrot.lane.b32.xlu0 %v199, 120
    %v214 = vpop.permute.xlu0 %213
    %215 = vrot.lane.b32.xlu0 %v200, 120
    %v216 = vpop.permute.xlu0 %215
    %217 = vrot.lane.b32.xlu0 %v201, 120
    %v218 = vpop.permute.xlu0 %217
    %s219 = scalar_lea.vmem [#allocation7], 192
    %v220 = vld [vmem:[%s219] sm:$0xff]
    %v221 = vld [vmem:[%s219 + $0x8] sm:$0xff]
    %v222 = vld [vmem:[%s219 + $0x10] sm:$0xff]
    %v223 = vld [vmem:[%s219 + $0x18] sm:$0xff]
    %v224 = vmul.f32 %v212, %v220
    %v225 = vmul.f32 %v214, %v221
    %v226 = vmul.f32 %v216, %v222
    %v227 = vmul.f32 %v218, %v223
    %v228 = vadd.f32 %v207, %v224
    %v229 = vadd.f32 %v208, %v225
    %v230 = vadd.f32 %v209, %v226
    %v231 = vadd.f32 %v210, %v227
    %232 = vrot.lane.b32.xlu0 %v198, 112
    %v233 = vpop.permute.xlu0 %232
    %234 = vrot.lane.b32.xlu0 %v199, 112
    %v235 = vpop.permute.xlu0 %234
    %236 = vrot.lane.b32.xlu0 %v200, 112
    %v237 = vpop.permute.xlu0 %236
    %238 = vrot.lane.b32.xlu0 %v201, 112
    %v239 = vpop.permute.xlu0 %238
    %s240 = scalar_lea.vmem [#allocation7], 224
    %v241 = vld [vmem:[%s240] sm:$0xff]
    %v242 = vld [vmem:[%s240 + $0x8] sm:$0xff]
    %v243 = vld [vmem:[%s240 + $0x10] sm:$0xff]
    %v244 = vld [vmem:[%s240 + $0x18] sm:$0xff]
    %v245 = vmul.f32 %v233, %v241
    %v246 = vmul.f32 %v235, %v242
    %v247 = vmul.f32 %v237, %v243
    %v248 = vmul.f32 %v239, %v244
    %v249 = vadd.f32 %v228, %v245
    %v250 = vadd.f32 %v229, %v246
    %v251 = vadd.f32 %v230, %v247
    %v252 = vadd.f32 %v231, %v248
    %253 = vrot.lane.b32.xlu0 %v198, 104
    %v254 = vpop.permute.xlu0 %253
    %255 = vrot.lane.b32.xlu0 %v199, 104
    %v256 = vpop.permute.xlu0 %255
    %257 = vrot.lane.b32.xlu0 %v200, 104
    %v258 = vpop.permute.xlu0 %257
    %259 = vrot.lane.b32.xlu0 %v201, 104
    %v260 = vpop.permute.xlu0 %259
    %s261 = scalar_lea.vmem [#allocation7], 256
    %v262 = vld [vmem:[%s261] sm:$0xff]
    %v263 = vld [vmem:[%s261 + $0x8] sm:$0xff]
    %v264 = vld [vmem:[%s261 + $0x10] sm:$0xff]
    %v265 = vld [vmem:[%s261 + $0x18] sm:$0xff]
    %v266 = vmul.f32 %v254, %v262
    %v267 = vmul.f32 %v256, %v263
    %v268 = vmul.f32 %v258, %v264
    %v269 = vmul.f32 %v260, %v265
    %v270 = vadd.f32 %v249, %v266
    %v271 = vadd.f32 %v250, %v267
    %v272 = vadd.f32 %v251, %v268
    %v273 = vadd.f32 %v252, %v269
    %274 = vrot.lane.b32.xlu0 %v198, 96
    %v275 = vpop.permute.xlu0 %274
    %276 = vrot.lane.b32.xlu0 %v199, 96
    %v277 = vpop.permute.xlu0 %276
    %278 = vrot.lane.b32.xlu0 %v200, 96
    %v279 = vpop.permute.xlu0 %278
    %280 = vrot.lane.b32.xlu0 %v201, 96
    %v281 = vpop.permute.xlu0 %280
    %s282 = scalar_lea.vmem [#allocation7], 288
    %v283 = vld [vmem:[%s282] sm:$0xff]
    %v284 = vld [vmem:[%s282 + $0x8] sm:$0xff]
    %v285 = vld [vmem:[%s282 + $0x10] sm:$0xff]
    %v286 = vld [vmem:[%s282 + $0x18] sm:$0xff]
    %v287 = vmul.f32 %v275, %v283
    %v288 = vmul.f32 %v277, %v284
    %v289 = vmul.f32 %v279, %v285
    %v290 = vmul.f32 %v281, %v286
    %v291 = vadd.f32 %v270, %v287
    %v292 = vadd.f32 %v271, %v288
    %v293 = vadd.f32 %v272, %v289
    %v294 = vadd.f32 %v273, %v290
    %v295 = vld [vmem:[#allocation4 + $0x2] sm:$0xff]
    %v296 = vld [vmem:[#allocation4 + $0xa] sm:$0xff]
    %v297 = vld [vmem:[#allocation4 + $0x12] sm:$0xff]
    %v298 = vld [vmem:[#allocation4 + $0x1a] sm:$0xff]
    %s299 = scalar_lea.vmem [#allocation7], 320
    %v300 = vld [vmem:[%s299] sm:$0xff]
    %v301 = vld [vmem:[%s299 + $0x8] sm:$0xff]
    %v302 = vld [vmem:[%s299 + $0x10] sm:$0xff]
    %v303 = vld [vmem:[%s299 + $0x18] sm:$0xff]
    %v304 = vmul.f32 %v295, %v300
    %v305 = vmul.f32 %v296, %v301
    %v306 = vmul.f32 %v297, %v302
    %v307 = vmul.f32 %v298, %v303
    %308 = vrot.lane.b32.xlu0 %v295, 120
    %v309 = vpop.permute.xlu0 %308
    %310 = vrot.lane.b32.xlu0 %v296, 120
    %v311 = vpop.permute.xlu0 %310
    %312 = vrot.lane.b32.xlu0 %v297, 120
    %v313 = vpop.permute.xlu0 %312
    %314 = vrot.lane.b32.xlu0 %v298, 120
    %v315 = vpop.permute.xlu0 %314
    %s316 = scalar_lea.vmem [#allocation7], 352
    %v317 = vld [vmem:[%s316] sm:$0xff]
    %v318 = vld [vmem:[%s316 + $0x8] sm:$0xff]
    %v319 = vld [vmem:[%s316 + $0x10] sm:$0xff]
    %v320 = vld [vmem:[%s316 + $0x18] sm:$0xff]
    %v321 = vmul.f32 %v309, %v317
    %v322 = vmul.f32 %v311, %v318
    %v323 = vmul.f32 %v313, %v319
    %v324 = vmul.f32 %v315, %v320
    %v325 = vadd.f32 %v304, %v321
    %v326 = vadd.f32 %v305, %v322
    %v327 = vadd.f32 %v306, %v323
    %v328 = vadd.f32 %v307, %v324
    %329 = vrot.lane.b32.xlu0 %v295, 112
    %v330 = vpop.permute.xlu0 %329
    %331 = vrot.lane.b32.xlu0 %v296, 112
    %v332 = vpop.permute.xlu0 %331
    %333 = vrot.lane.b32.xlu0 %v297, 112
    %v334 = vpop.permute.xlu0 %333
    %335 = vrot.lane.b32.xlu0 %v298, 112
    %v336 = vpop.permute.xlu0 %335
    %s337 = scalar_lea.vmem [#allocation7], 384
    %v338 = vld [vmem:[%s337] sm:$0xff]
    %v339 = vld [vmem:[%s337 + $0x8] sm:$0xff]
    %v340 = vld [vmem:[%s337 + $0x10] sm:$0xff]
    %v341 = vld [vmem:[%s337 + $0x18] sm:$0xff]
    %v342 = vmul.f32 %v330, %v338
    %v343 = vmul.f32 %v332, %v339
    %v344 = vmul.f32 %v334, %v340
    %v345 = vmul.f32 %v336, %v341
    %v346 = vadd.f32 %v325, %v342
    %v347 = vadd.f32 %v326, %v343
    %v348 = vadd.f32 %v327, %v344
    %v349 = vadd.f32 %v328, %v345
    %350 = vrot.lane.b32.xlu0 %v295, 104
    %v351 = vpop.permute.xlu0 %350
    %352 = vrot.lane.b32.xlu0 %v296, 104
    %v353 = vpop.permute.xlu0 %352
    %354 = vrot.lane.b32.xlu0 %v297, 104
    %v355 = vpop.permute.xlu0 %354
    %356 = vrot.lane.b32.xlu0 %v298, 104
    %v357 = vpop.permute.xlu0 %356
    %s358 = scalar_lea.vmem [#allocation7], 416
    %v359 = vld [vmem:[%s358] sm:$0xff]
    %v360 = vld [vmem:[%s358 + $0x8] sm:$0xff]
    %v361 = vld [vmem:[%s358 + $0x10] sm:$0xff]
    %v362 = vld [vmem:[%s358 + $0x18] sm:$0xff]
    %v363 = vmul.f32 %v351, %v359
    %v364 = vmul.f32 %v353, %v360
    %v365 = vmul.f32 %v355, %v361
    %v366 = vmul.f32 %v357, %v362
    %v367 = vadd.f32 %v346, %v363
    %v368 = vadd.f32 %v347, %v364
    %v369 = vadd.f32 %v348, %v365
    %v370 = vadd.f32 %v349, %v366
    %371 = vrot.lane.b32.xlu0 %v295, 96
    %v372 = vpop.permute.xlu0 %371
    %373 = vrot.lane.b32.xlu0 %v296, 96
    %v374 = vpop.permute.xlu0 %373
    %375 = vrot.lane.b32.xlu0 %v297, 96
    %v376 = vpop.permute.xlu0 %375
    %377 = vrot.lane.b32.xlu0 %v298, 96
    %v378 = vpop.permute.xlu0 %377
    %s379 = scalar_lea.vmem [#allocation7], 448
    %v380 = vld [vmem:[%s379] sm:$0xff]
    %v381 = vld [vmem:[%s379 + $0x8] sm:$0xff]
    %v382 = vld [vmem:[%s379 + $0x10] sm:$0xff]
    %v383 = vld [vmem:[%s379 + $0x18] sm:$0xff]
    %v384 = vmul.f32 %v372, %v380
    %v385 = vmul.f32 %v374, %v381
    %v386 = vmul.f32 %v376, %v382
    %v387 = vmul.f32 %v378, %v383
    %v388 = vadd.f32 %v367, %v384
    %v389 = vadd.f32 %v368, %v385
    %v390 = vadd.f32 %v369, %v386
    %v391 = vadd.f32 %v370, %v387
    %v392 = vld [vmem:[#allocation4 + $0x3] sm:$0xff]
    %v393 = vld [vmem:[#allocation4 + $0xb] sm:$0xff]
    %v394 = vld [vmem:[#allocation4 + $0x13] sm:$0xff]
    %v395 = vld [vmem:[#allocation4 + $0x1b] sm:$0xff]
    %s396 = scalar_lea.vmem [#allocation7], 480
    %v397 = vld [vmem:[%s396] sm:$0xff]
    %v398 = vld [vmem:[%s396 + $0x8] sm:$0xff]
    %v399 = vld [vmem:[%s396 + $0x10] sm:$0xff]
    %v400 = vld [vmem:[%s396 + $0x18] sm:$0xff]
    %v401 = vmul.f32 %v392, %v397
    %v402 = vmul.f32 %v393, %v398
    %v403 = vmul.f32 %v394, %v399
    %v404 = vmul.f32 %v395, %v400
    %405 = vrot.lane.b32.xlu0 %v392, 120
    %v406 = vpop.permute.xlu0 %405
    %407 = vrot.lane.b32.xlu0 %v393, 120
    %v408 = vpop.permute.xlu0 %407
    %409 = vrot.lane.b32.xlu0 %v394, 120
    %v410 = vpop.permute.xlu0 %409
    %411 = vrot.lane.b32.xlu0 %v395, 120
    %v412 = vpop.permute.xlu0 %411
    %s413 = scalar_lea.vmem [#allocation7], 512
    %v414 = vld [vmem:[%s413] sm:$0xff]
    %v415 = vld [vmem:[%s413 + $0x8] sm:$0xff]
    %v416 = vld [vmem:[%s413 + $0x10] sm:$0xff]
    %v417 = vld [vmem:[%s413 + $0x18] sm:$0xff]
    %v418 = vmul.f32 %v406, %v414
    %v419 = vmul.f32 %v408, %v415
    %v420 = vmul.f32 %v410, %v416
    %v421 = vmul.f32 %v412, %v417
    %v422 = vadd.f32 %v401, %v418
    %v423 = vadd.f32 %v402, %v419
    %v424 = vadd.f32 %v403, %v420
    %v425 = vadd.f32 %v404, %v421
    %426 = vrot.lane.b32.xlu0 %v392, 112
    %v427 = vpop.permute.xlu0 %426
    %428 = vrot.lane.b32.xlu0 %v393, 112
    %v429 = vpop.permute.xlu0 %428
    %430 = vrot.lane.b32.xlu0 %v394, 112
    %v431 = vpop.permute.xlu0 %430
    %432 = vrot.lane.b32.xlu0 %v395, 112
    %v433 = vpop.permute.xlu0 %432
    %s434 = scalar_lea.vmem [#allocation7], 544
    %v435 = vld [vmem:[%s434] sm:$0xff]
    %v436 = vld [vmem:[%s434 + $0x8] sm:$0xff]
    %v437 = vld [vmem:[%s434 + $0x10] sm:$0xff]
    %v438 = vld [vmem:[%s434 + $0x18] sm:$0xff]
    %v439 = vmul.f32 %v427, %v435
    %v440 = vmul.f32 %v429, %v436
    %v441 = vmul.f32 %v431, %v437
    %v442 = vmul.f32 %v433, %v438
    %v443 = vadd.f32 %v422, %v439
    %v444 = vadd.f32 %v423, %v440
    %v445 = vadd.f32 %v424, %v441
    %v446 = vadd.f32 %v425, %v442
    %447 = vrot.lane.b32.xlu0 %v392, 104
    %v448 = vpop.permute.xlu0 %447
    %449 = vrot.lane.b32.xlu0 %v393, 104
    %v450 = vpop.permute.xlu0 %449
    %451 = vrot.lane.b32.xlu0 %v394, 104
    %v452 = vpop.permute.xlu0 %451
    %453 = vrot.lane.b32.xlu0 %v395, 104
    %v454 = vpop.permute.xlu0 %453
    %s455 = scalar_lea.vmem [#allocation7], 576
    %v456 = vld [vmem:[%s455] sm:$0xff]
    %v457 = vld [vmem:[%s455 + $0x8] sm:$0xff]
    %v458 = vld [vmem:[%s455 + $0x10] sm:$0xff]
    %v459 = vld [vmem:[%s455 + $0x18] sm:$0xff]
    %v460 = vmul.f32 %v448, %v456
    %v461 = vmul.f32 %v450, %v457
    %v462 = vmul.f32 %v452, %v458
    %v463 = vmul.f32 %v454, %v459
    %v464 = vadd.f32 %v443, %v460
    %v465 = vadd.f32 %v444, %v461
    %v466 = vadd.f32 %v445, %v462
    %v467 = vadd.f32 %v446, %v463
    %468 = vrot.lane.b32.xlu0 %v392, 96
    %v469 = vpop.permute.xlu0 %468
    %470 = vrot.lane.b32.xlu0 %v393, 96
    %v471 = vpop.permute.xlu0 %470
    %472 = vrot.lane.b32.xlu0 %v394, 96
    %v473 = vpop.permute.xlu0 %472
    %474 = vrot.lane.b32.xlu0 %v395, 96
    %v475 = vpop.permute.xlu0 %474
    %s476 = scalar_lea.vmem [#allocation7], 608
    %v477 = vld [vmem:[%s476] sm:$0xff]
    %v478 = vld [vmem:[%s476 + $0x8] sm:$0xff]
    %v479 = vld [vmem:[%s476 + $0x10] sm:$0xff]
    %v480 = vld [vmem:[%s476 + $0x18] sm:$0xff]
    %v481 = vmul.f32 %v469, %v477
    %v482 = vmul.f32 %v471, %v478
    %v483 = vmul.f32 %v473, %v479
    %v484 = vmul.f32 %v475, %v480
    %v485 = vadd.f32 %v464, %v481
    %v486 = vadd.f32 %v465, %v482
    %v487 = vadd.f32 %v466, %v483
    %v488 = vadd.f32 %v467, %v484
    %v489 = vld [vmem:[#allocation4 + $0x4] sm:$0xff]
    %v490 = vld [vmem:[#allocation4 + $0xc] sm:$0xff]
    %v491 = vld [vmem:[#allocation4 + $0x14] sm:$0xff]
    %v492 = vld [vmem:[#allocation4 + $0x1c] sm:$0xff]
    %s493 = scalar_lea.vmem [#allocation7], 640
    %v494 = vld [vmem:[%s493] sm:$0xff]
    %v495 = vld [vmem:[%s493 + $0x8] sm:$0xff]
    %v496 = vld [vmem:[%s493 + $0x10] sm:$0xff]
    %v497 = vld [vmem:[%s493 + $0x18] sm:$0xff]
    %v498 = vmul.f32 %v489, %v494
    %v499 = vmul.f32 %v490, %v495
    %v500 = vmul.f32 %v491, %v496
    %v501 = vmul.f32 %v492, %v497
    %502 = vrot.lane.b32.xlu0 %v489, 120
    %v503 = vpop.permute.xlu0 %502
    %504 = vrot.lane.b32.xlu0 %v490, 120
    %v505 = vpop.permute.xlu0 %504
    %506 = vrot.lane.b32.xlu0 %v491, 120
    %v507 = vpop.permute.xlu0 %506
    %508 = vrot.lane.b32.xlu0 %v492, 120
    %v509 = vpop.permute.xlu0 %508
    %s510 = scalar_lea.vmem [#allocation7], 672
    %v511 = vld [vmem:[%s510] sm:$0xff]
    %v512 = vld [vmem:[%s510 + $0x8] sm:$0xff]
    %v513 = vld [vmem:[%s510 + $0x10] sm:$0xff]
    %v514 = vld [vmem:[%s510 + $0x18] sm:$0xff]
    %v515 = vmul.f32 %v503, %v511
    %v516 = vmul.f32 %v505, %v512
    %v517 = vmul.f32 %v507, %v513
    %v518 = vmul.f32 %v509, %v514
    %v519 = vadd.f32 %v498, %v515
    %v520 = vadd.f32 %v499, %v516
    %v521 = vadd.f32 %v500, %v517
    %v522 = vadd.f32 %v501, %v518
    %523 = vrot.lane.b32.xlu0 %v489, 112
    %v524 = vpop.permute.xlu0 %523
    %525 = vrot.lane.b32.xlu0 %v490, 112
    %v526 = vpop.permute.xlu0 %525
    %527 = vrot.lane.b32.xlu0 %v491, 112
    %v528 = vpop.permute.xlu0 %527
    %529 = vrot.lane.b32.xlu0 %v492, 112
    %v530 = vpop.permute.xlu0 %529
    %s531 = scalar_lea.vmem [#allocation7], 704
    %v532 = vld [vmem:[%s531] sm:$0xff]
    %v533 = vld [vmem:[%s531 + $0x8] sm:$0xff]
    %v534 = vld [vmem:[%s531 + $0x10] sm:$0xff]
    %v535 = vld [vmem:[%s531 + $0x18] sm:$0xff]
    %v536 = vmul.f32 %v524, %v532
    %v537 = vmul.f32 %v526, %v533
    %v538 = vmul.f32 %v528, %v534
    %v539 = vmul.f32 %v530, %v535
    %v540 = vadd.f32 %v519, %v536
    %v541 = vadd.f32 %v520, %v537
    %v542 = vadd.f32 %v521, %v538
    %v543 = vadd.f32 %v522, %v539
    %544 = vrot.lane.b32.xlu0 %v489, 104
    %v545 = vpop.permute.xlu0 %544
    %546 = vrot.lane.b32.xlu0 %v490, 104
    %v547 = vpop.permute.xlu0 %546
    %548 = vrot.lane.b32.xlu0 %v491, 104
    %v549 = vpop.permute.xlu0 %548
    %550 = vrot.lane.b32.xlu0 %v492, 104
    %v551 = vpop.permute.xlu0 %550
    %s552 = scalar_lea.vmem [#allocation7], 736
    %v553 = vld [vmem:[%s552] sm:$0xff]
    %v554 = vld [vmem:[%s552 + $0x8] sm:$0xff]
    %v555 = vld [vmem:[%s552 + $0x10] sm:$0xff]
    %v556 = vld [vmem:[%s552 + $0x18] sm:$0xff]
    %v557 = vmul.f32 %v545, %v553
    %v558 = vmul.f32 %v547, %v554
    %v559 = vmul.f32 %v549, %v555
    %v560 = vmul.f32 %v551, %v556
    %v561 = vadd.f32 %v540, %v557
    %v562 = vadd.f32 %v541, %v558
    %v563 = vadd.f32 %v542, %v559
    %v564 = vadd.f32 %v543, %v560
    %565 = vrot.lane.b32.xlu0 %v489, 96
    %v566 = vpop.permute.xlu0 %565
    %567 = vrot.lane.b32.xlu0 %v490, 96
    %v568 = vpop.permute.xlu0 %567
    %569 = vrot.lane.b32.xlu0 %v491, 96
    %v570 = vpop.permute.xlu0 %569
    %571 = vrot.lane.b32.xlu0 %v492, 96
    %v572 = vpop.permute.xlu0 %571
    %s573 = scalar_lea.vmem [#allocation7], 768
    %v574 = vld [vmem:[%s573] sm:$0xff]
    %v575 = vld [vmem:[%s573 + $0x8] sm:$0xff]
    %v576 = vld [vmem:[%s573 + $0x10] sm:$0xff]
    %v577 = vld [vmem:[%s573 + $0x18] sm:$0xff]
    %v578 = vmul.f32 %v566, %v574
    %v579 = vmul.f32 %v568, %v575
    %v580 = vmul.f32 %v570, %v576
    %v581 = vmul.f32 %v572, %v577
    %v582 = vadd.f32 %v561, %v578
    %v583 = vadd.f32 %v562, %v579
    %v584 = vadd.f32 %v563, %v580
    %v585 = vadd.f32 %v564, %v581
    %v586 = vadd.f32 %v194, %v291
    %v587 = vadd.f32 %v195, %v292
    %v588 = vadd.f32 %v196, %v293
    %v589 = vadd.f32 %v197, %v294
    %v590 = vadd.f32 %v388, %v485
    %v591 = vadd.f32 %v389, %v486
    %v592 = vadd.f32 %v390, %v487
    %v593 = vadd.f32 %v391, %v488
    %v594 = vadd.f32 %v586, %v590
    %v595 = vadd.f32 %v587, %v591
    %v596 = vadd.f32 %v588, %v592
    %v597 = vadd.f32 %v589, %v593
    %v598 = vadd.f32 %v594, %v582
    %v599 = vadd.f32 %v595, %v583
    %v600 = vadd.f32 %v596, %v584
    %v601 = vadd.f32 %v597, %v585
    %602 = vst [vmem:[#allocation14] sm:$0xff] %v598
    %603 = vst [vmem:[#allocation14 + $0x8] sm:$0xff] %v599
    %604 = vst [vmem:[#allocation14 + $0x10] sm:$0xff] %v600
    %605 = vst [vmem:[#allocation14 + $0x18] sm:$0xff] %v601
    %606 = vst [vmem:[#allocation14 + $0x20] sm:$0xff] 0.0
    %v607 = vld [vmem:[#allocation14] sm:$0xff]
    %v608 = vld [vmem:[#allocation14 + $0x8] sm:$0xff]
    %v609 = vld [vmem:[#allocation14 + $0x10] sm:$0xff]
    %v610 = vld [vmem:[#allocation14 + $0x18] sm:$0xff]
    %v611 = vld [vmem:[#allocation14 + $0x1] sm:$0xff]
    %v612 = vld [vmem:[#allocation14 + $0x9] sm:$0xff]
    %v613 = vld [vmem:[#allocation14 + $0x11] sm:$0xff]
    %v614 = vld [vmem:[#allocation14 + $0x19] sm:$0xff]
    %v615 = vld [vmem:[#allocation14 + $0x2] sm:$0xff]
    %v616 = vld [vmem:[#allocation14 + $0xa] sm:$0xff]
    %v617 = vld [vmem:[#allocation14 + $0x12] sm:$0xff]
    %v618 = vld [vmem:[#allocation14 + $0x1a] sm:$0xff]
    %v619 = vld [vmem:[#allocation9] sm:$0xff]
    %v620 = vld [vmem:[#allocation9 + $0x8] sm:$0xff]
    %v621 = vld [vmem:[#allocation9 + $0x10] sm:$0xff]
    %v622 = vld [vmem:[#allocation9 + $0x18] sm:$0xff]
    %v623 = vld [vmem:[#allocation9 + $0x20] sm:$0xff]
    %v624 = vld [vmem:[#allocation9 + $0x28] sm:$0xff]
    %v625 = vld [vmem:[#allocation9 + $0x30] sm:$0xff]
    %v626 = vld [vmem:[#allocation9 + $0x38] sm:$0xff]
    %v627 = vld [vmem:[#allocation9 + $0x40] sm:$0xff]
    %v628 = vld [vmem:[#allocation9 + $0x48] sm:$0xff]
    %v629 = vld [vmem:[#allocation9 + $0x50] sm:$0xff]
    %v630 = vld [vmem:[#allocation9 + $0x58] sm:$0xff]
    %v631 = vld [vmem:[#allocation9 + $0x60] sm:$0xff]
    %v632 = vld [vmem:[#allocation9 + $0x68] sm:$0xff]
    %v633 = vld [vmem:[#allocation9 + $0x70] sm:$0xff]
    %v634 = vld [vmem:[#allocation9 + $0x78] sm:$0xff]
    %v635 = vld [vmem:[#allocation9 + $0x80] sm:$0xff]
    %v636 = vld [vmem:[#allocation9 + $0x88] sm:$0xff]
    %v637 = vld [vmem:[#allocation9 + $0x90] sm:$0xff]
    %v638 = vld [vmem:[#allocation9 + $0x98] sm:$0xff]
    %v639 = vld [vmem:[#allocation9 + $0xa0] sm:$0xff]
    %v640 = vld [vmem:[#allocation9 + $0xa8] sm:$0xff]
    %v641 = vld [vmem:[#allocation9 + $0xb0] sm:$0xff]
    %v642 = vld [vmem:[#allocation9 + $0xb8] sm:$0xff]
    %v643 = vld [vmem:[#allocation9 + $0xc0] sm:$0xff]
    %v644 = vld [vmem:[#allocation9 + $0xc8] sm:$0xff]
    %v645 = vld [vmem:[#allocation9 + $0xd0] sm:$0xff]
    %v646 = vld [vmem:[#allocation9 + $0xd8] sm:$0xff]
    %v647 = vld [vmem:[#allocation9 + $0xe0] sm:$0xff]
    %v648 = vld [vmem:[#allocation9 + $0xe8] sm:$0xff]
    %v649 = vld [vmem:[#allocation9 + $0xf0] sm:$0xff]
    %v650 = vld [vmem:[#allocation9 + $0xf8] sm:$0xff]
    %v651 = vld [vmem:[#allocation9 + $0x100] sm:$0xff]
    %v652 = vld [vmem:[#allocation9 + $0x108] sm:$0xff]
    %v653 = vld [vmem:[#allocation9 + $0x110] sm:$0xff]
    %v654 = vld [vmem:[#allocation9 + $0x118] sm:$0xff]
    %v655 = vld [vmem:[#allocation9 + $0x120] sm:$0xff]
    %v656 = vld [vmem:[#allocation9 + $0x128] sm:$0xff]
    %v657 = vld [vmem:[#allocation9 + $0x130] sm:$0xff]
    %v658 = vld [vmem:[#allocation9 + $0x138] sm:$0xff]
    %v659 = vld [vmem:[#allocation9 + $0x140] sm:$0xff]
    %v660 = vld [vmem:[#allocation9 + $0x148] sm:$0xff]
    %v661 = vld [vmem:[#allocation9 + $0x150] sm:$0xff]
    %v662 = vld [vmem:[#allocation9 + $0x158] sm:$0xff]
    %v663 = vld [vmem:[#allocation9 + $0x160] sm:$0xff]
    %v664 = vld [vmem:[#allocation9 + $0x168] sm:$0xff]
    %v665 = vld [vmem:[#allocation9 + $0x170] sm:$0xff]
    %v666 = vld [vmem:[#allocation9 + $0x178] sm:$0xff]
    %v667 = vld [vmem:[%s3] sm:$0x1]
    %v669 = vlaneseq
    %v670 = vshrl.u32 %v669, 7
    %v671 = vsub.s32 0, %v670
    %v672 = vrot.slane %v667, %v671
    %674 = vmatprep.subr.mxu0 0.0
    %675 = vmatpush1.msra.mxu0 %v619
    %676 = vmatprep.subr.mxu0 0.0
    %677 = vmatpush1.msra.mxu0 %v620
    %678 = vmatprep.subr.mxu0 0.0
    %679 = vmatpush1.msra.mxu0 %v621
    %680 = vmatprep.subr.mxu0 0.0
    %681 = vmatpush1.msra.mxu0 %v622
    %682 = vmatprep.subr.mxu0 0.0
    %683 = vmatpush1.msra.mxu0 %v623
    %684 = vmatprep.subr.mxu0 0.0
    %685 = vmatpush1.msra.mxu0 %v624
    %686 = vmatprep.subr.mxu0 0.0
    %687 = vmatpush1.msra.mxu0 %v625
    %688 = vmatprep.subr.mxu0 0.0
    %689 = vmatpush1.msra.mxu0 %v626
    %690 = vmatprep.subr.mxu0 0.0
    %691 = vmatpush1.msra.mxu0 %v627
    %692 = vmatprep.subr.mxu0 0.0
    %693 = vmatpush1.msra.mxu0 %v628
    %694 = vmatprep.subr.mxu0 0.0
    %695 = vmatpush1.msra.mxu0 %v629
    %696 = vmatprep.subr.mxu0 0.0
    %697 = vmatpush1.msra.mxu0 %v630
    %698 = vmatprep.subr.mxu0 0.0
    %699 = vmatpush1.msra.mxu0 %v631
    %700 = vmatprep.subr.mxu0 0.0
    %701 = vmatpush1.msra.mxu0 %v632
    %702 = vmatprep.subr.mxu0 0.0
    %703 = vmatpush1.msra.mxu0 %v633
    %704 = vmatprep.subr.mxu0 0.0
    %705 = vmatpush1.msra.mxu0 %v634
    %706 = vmatprep.subr.mxu0 0.0
    %707 = vmatpush1.msra.mxu0 %v635
    %708 = vmatprep.subr.mxu0 0.0
    %709 = vmatpush1.msra.mxu0 %v636
    %710 = vmatprep.subr.mxu0 0.0
    %711 = vmatpush1.msra.mxu0 %v637
    %712 = vmatprep.subr.mxu0 0.0
    %713 = vmatpush1.msra.mxu0 %v638
    %714 = vmatprep.subr.mxu0 0.0
    %715 = vmatpush1.msra.mxu0 %v639
    %716 = vmatprep.subr.mxu0 0.0
    %717 = vmatpush1.msra.mxu0 %v640
    %718 = vmatprep.subr.mxu0 0.0
    %719 = vmatpush1.msra.mxu0 %v641
    %720 = vmatprep.subr.mxu0 0.0
    %721 = vmatpush1.msra.mxu0 %v642
    %722 = vmatprep.subr.mxu0 0.0
    %723 = vmatpush1.msra.mxu0 %v643
    %724 = vmatprep.subr.mxu0 0.0
    %725 = vmatpush1.msra.mxu0 %v644
    %726 = vmatprep.subr.mxu0 0.0
    %727 = vmatpush1.msra.mxu0 %v645
    %728 = vmatprep.subr.mxu0 0.0
    %729 = vmatpush1.msra.mxu0 %v646
    %730 = vmatprep.subr.mxu0 0.0
    %731 = vmatpush1.msra.mxu0 %v647
    %732 = vmatprep.subr.mxu0 0.0
    %733 = vmatpush1.msra.mxu0 %v648
    %734 = vmatprep.subr.mxu0 0.0
    %735 = vmatpush1.msra.mxu0 %v649
    %736 = vmatprep.subr.mxu0 0.0
    %737 = vmatpush1.msra.mxu0 %v650
    %738 = vmatprep.mubr.f32.mxu0 %v611
    %739 = vmatmul.mubr.f32.gmra.mrb[0].mxu0 %v607
    %v740 = vpop.f32.mrb[0].mxu0
    %v741 = vadd.f32 %v672, %v740
    %v742 = vpop.f32.mrb[0].mxu0
    %743 = vmatprep.mubr.f32.mxu0 %v612
    %744 = vmatmul.mubr.f32.gmra.mrb[0].mxu0 %v608
    %v745 = vpop.f32.mrb[0].mxu0
    %v746 = vadd.f32 %v672, %v745
    %v747 = vpop.f32.mrb[0].mxu0
    %748 = vmatprep.mubr.f32.mxu0 %v613
    %749 = vmatmul.mubr.f32.gmra.mrb[0].mxu0 %v609
    %v750 = vpop.f32.mrb[0].mxu0
    %v751 = vadd.f32 %v672, %v750
    %v752 = vpop.f32.mrb[0].mxu0
    %753 = vmatprep.mubr.f32.mxu0 %v614
    %754 = vmatmul.mubr.f32.gmra.mrb[0].mxu0 %v610
    %v755 = vpop.f32.mrb[0].mxu0
    %v756 = vadd.f32 %v672, %v755
    %v757 = vpop.f32.mrb[0].mxu0
    %758 = vdwg.mxu0
    %759 = vmatprep.subr.mxu0 0.0
    %760 = vmatpush1.msra.mxu0 %v651
    %761 = vmatprep.subr.mxu0 0.0
    %762 = vmatpush1.msra.mxu0 %v652
    %763 = vmatprep.subr.mxu0 0.0
    %764 = vmatpush1.msra.mxu0 %v653
    %765 = vmatprep.subr.mxu0 0.0
    %766 = vmatpush1.msra.mxu0 %v654
    %767 = vmatprep.subr.mxu0 0.0
    %768 = vmatpush1.msra.mxu0 %v655
    %769 = vmatprep.subr.mxu0 0.0
    %770 = vmatpush1.msra.mxu0 %v656
    %771 = vmatprep.subr.mxu0 0.0
    %772 = vmatpush1.msra.mxu0 %v657
    %773 = vmatprep.subr.mxu0 0.0
    %774 = vmatpush1.msra.mxu0 %v658
    %775 = vmatprep.subr.mxu0 0.0
    %776 = vmatpush1.msra.mxu0 %v659
    %777 = vmatprep.subr.mxu0 0.0
    %778 = vmatpush1.msra.mxu0 %v660
    %779 = vmatprep.subr.mxu0 0.0
    %780 = vmatpush1.msra.mxu0 %v661
    %781 = vmatprep.subr.mxu0 0.0
    %782 = vmatpush1.msra.mxu0 %v662
    %783 = vmatprep.subr.mxu0 0.0
    %784 = vmatpush1.msra.mxu0 %v663
    %785 = vmatprep.subr.mxu0 0.0
    %786 = vmatpush1.msra.mxu0 %v664
    %787 = vmatprep.subr.mxu0 0.0
    %788 = vmatpush1.msra.mxu0 %v665
    %789 = vmatprep.subr.mxu0 0.0
    %790 = vmatpush1.msra.mxu0 %v666
    %791 = vmatprep.subr.mxu0 0.0
    %792 = vmatpush1.msra.mxu0 0.0
    %793 = vmatprep.subr.mxu0 0.0
    %794 = vmatpush1.msra.mxu0 0.0
    %795 = vmatprep.subr.mxu0 0.0
    %796 = vmatpush1.msra.mxu0 0.0
    %797 = vmatprep.subr.mxu0 0.0
    %798 = vmatpush1.msra.mxu0 0.0
    %799 = vmatprep.subr.mxu0 0.0
    %800 = vmatpush1.msra.mxu0 0.0
    %801 = vmatprep.subr.mxu0 0.0
    %802 = vmatpush1.msra.mxu0 0.0
    %803 = vmatprep.subr.mxu0 0.0
    %804 = vmatpush1.msra.mxu0 0.0
    %805 = vmatprep.subr.mxu0 0.0
    %806 = vmatpush1.msra.mxu0 0.0
    %807 = vmatprep.subr.mxu0 0.0
    %808 = vmatpush1.msra.mxu0 0.0
    %809 = vmatprep.subr.mxu0 0.0
    %810 = vmatpush1.msra.mxu0 0.0
    %811 = vmatprep.subr.mxu0 0.0
    %812 = vmatpush1.msra.mxu0 0.0
    %813 = vmatprep.subr.mxu0 0.0
    %814 = vmatpush1.msra.mxu0 0.0
    %815 = vmatprep.subr.mxu0 0.0
    %816 = vmatpush1.msra.mxu0 0.0
    %817 = vmatprep.subr.mxu0 0.0
    %818 = vmatpush1.msra.mxu0 0.0
    %819 = vmatprep.subr.mxu0 0.0
    %820 = vmatpush1.msra.mxu0 0.0
    %821 = vmatprep.subr.mxu0 0.0
    %822 = vmatpush1.msra.mxu0 0.0
    %823 = vmatprep.mubr.f32.mxu0 0.0
    %824 = vmatmul.mubr.f32.gmra.mrb[0].mxu0 %v615
    %v825 = vpop.f32.mrb[0].mxu0
    %v826 = vadd.f32 %v741, %v825
    %v827 = vpop.f32.mrb[0].mxu0
    %828 = vmatprep.mubr.f32.mxu0 0.0
    %829 = vmatmul.mubr.f32.gmra.mrb[0].mxu0 %v616
    %v830 = vpop.f32.mrb[0].mxu0
    %v831 = vadd.f32 %v746, %v830
    %v832 = vpop.f32.mrb[0].mxu0
    %833 = vmatprep.mubr.f32.mxu0 0.0
    %834 = vmatmul.mubr.f32.gmra.mrb[0].mxu0 %v617
    %v835 = vpop.f32.mrb[0].mxu0
    %v836 = vadd.f32 %v751, %v835
    %v837 = vpop.f32.mrb[0].mxu0
    %838 = vmatprep.mubr.f32.mxu0 0.0
    %839 = vmatmul.mubr.f32.gmra.mrb[0].mxu0 %v618
    %v840 = vpop.f32.mrb[0].mxu0
    %v841 = vadd.f32 %v756, %v840
    %v842 = vpop.f32.mrb[0].mxu0
    %843 = vdwg.mxu0
    %v844 = vmax.f32 %v826, 0.0
    %v845 = vmax.f32 %v831, 0.0
    %v846 = vmax.f32 %v836, 0.0
    %v847 = vmax.f32 %v841, 0.0
    %848 = vst [vmem:[#allocation2] sm:$0xff] %v844
    %849 = vst [vmem:[#allocation2 + $0x8] sm:$0xff] %v845
    %850 = vst [vmem:[#allocation2 + $0x10] sm:$0xff] %v846
    %851 = vst [vmem:[#allocation2 + $0x18] sm:$0xff] %v847
    %852 = vst [vmem:[#allocation2 + $0x20] sm:$0xff] 0.0
    %v853 = vld [vmem:[#allocation2] sm:$0xff]
    %v854 = vld [vmem:[#allocation2 + $0x8] sm:$0xff]
    %v855 = vld [vmem:[#allocation2 + $0x10] sm:$0xff]
    %v856 = vld [vmem:[#allocation2 + $0x18] sm:$0xff]
    %v857 = vld [vmem:[#allocation2 + $0x1] sm:$0xff]
    %v858 = vld [vmem:[#allocation2 + $0x9] sm:$0xff]
    %v859 = vld [vmem:[#allocation2 + $0x11] sm:$0xff]
    %v860 = vld [vmem:[#allocation2 + $0x19] sm:$0xff]
    %v861 = vld [vmem:[#allocation2 + $0x2] sm:$0xff]
    %v862 = vld [vmem:[#allocation2 + $0xa] sm:$0xff]
    %v863 = vld [vmem:[#allocation2 + $0x12] sm:$0xff]
    %v864 = vld [vmem:[#allocation2 + $0x1a] sm:$0xff]
    %v865 = vld [vmem:[#allocation10] sm:$0xff]
    %v866 = vld [vmem:[#allocation10 + $0x8] sm:$0xff]
    %v867 = vld [vmem:[#allocation10 + $0x10] sm:$0xff]
    %v868 = vld [vmem:[#allocation10 + $0x18] sm:$0xff]
    %v869 = vld [vmem:[#allocation10 + $0x20] sm:$0xff]
    %v870 = vld [vmem:[#allocation10 + $0x28] sm:$0xff]
    %v871 = vld [vmem:[#allocation10 + $0x30] sm:$0xff]
    %v872 = vld [vmem:[#allocation10 + $0x38] sm:$0xff]
    %v873 = vld [vmem:[#allocation10 + $0x40] sm:$0xff]
    %v874 = vld [vmem:[#allocation10 + $0x48] sm:$0xff]
    %v875 = vld [vmem:[#allocation10 + $0x50] sm:$0xff]
    %v876 = vld [vmem:[#allocation10 + $0x58] sm:$0xff]
    %v877 = vld [vmem:[#allocation10 + $0x60] sm:$0xff]
    %v878 = vld [vmem:[#allocation10 + $0x68] sm:$0xff]
    %v879 = vld [vmem:[#allocation10 + $0x70] sm:$0xff]
    %v880 = vld [vmem:[#allocation10 + $0x78] sm:$0xff]
    %v881 = vld [vmem:[#allocation10 + $0x80] sm:$0xff]
    %v882 = vld [vmem:[#allocation10 + $0x88] sm:$0xff]
    %v883 = vld [vmem:[#allocation10 + $0x90] sm:$0xff]
    %v884 = vld [vmem:[#allocation10 + $0x98] sm:$0xff]
    %v885 = vld [vmem:[#allocation10 + $0xa0] sm:$0xff]
    %v886 = vld [vmem:[#allocation10 + $0xa8] sm:$0xff]
    %v887 = vld [vmem:[#allocation10 + $0xb0] sm:$0xff]
    %v888 = vld [vmem:[#allocation10 + $0xb8] sm:$0xff]
    %v889 = vld [vmem:[#allocation10 + $0xc0] sm:$0xff]
    %v890 = vld [vmem:[#allocation10 + $0xc8] sm:$0xff]
    %v891 = vld [vmem:[#allocation10 + $0xd0] sm:$0xff]
    %v892 = vld [vmem:[#allocation10 + $0xd8] sm:$0xff]
    %v893 = vld [vmem:[#allocation10 + $0xe0] sm:$0xff]
    %v894 = vld [vmem:[#allocation10 + $0xe8] sm:$0xff]
    %v895 = vld [vmem:[#allocation10 + $0xf0] sm:$0xff]
    %v896 = vld [vmem:[#allocation10 + $0xf8] sm:$0xff]
    %v897 = vld [vmem:[#allocation10 + $0x100] sm:$0xff]
    %v898 = vld [vmem:[#allocation10 + $0x108] sm:$0xff]
    %v899 = vld [vmem:[#allocation10 + $0x110] sm:$0xff]
    %v900 = vld [vmem:[#allocation10 + $0x118] sm:$0xff]
    %v901 = vld [vmem:[#allocation10 + $0x120] sm:$0xff]
    %v902 = vld [vmem:[#allocation10 + $0x128] sm:$0xff]
    %v903 = vld [vmem:[#allocation10 + $0x130] sm:$0xff]
    %v904 = vld [vmem:[#allocation10 + $0x138] sm:$0xff]
    %v905 = vld [vmem:[#allocation10 + $0x140] sm:$0xff]
    %v906 = vld [vmem:[#allocation10 + $0x148] sm:$0xff]
    %v907 = vld [vmem:[#allocation10 + $0x150] sm:$0xff]
    %v908 = vld [vmem:[#allocation10 + $0x158] sm:$0xff]
    %v909 = vld [vmem:[#allocation10 + $0x160] sm:$0xff]
    %v910 = vld [vmem:[#allocation10 + $0x168] sm:$0xff]
    %v911 = vld [vmem:[#allocation10 + $0x170] sm:$0xff]
    %v912 = vld [vmem:[#allocation10 + $0x178] sm:$0xff]
    %v913 = vld [vmem:[%s5] sm:$0x1]
    %v915 = vlaneseq
    %v916 = vshrl.u32 %v915, 7
    %v917 = vsub.s32 0, %v916
    %v918 = vrot.slane %v913, %v917
    %920 = vmatprep.subr.mxu0 0.0
    %921 = vmatpush1.msra.mxu0 %v865
    %922 = vmatprep.subr.mxu0 0.0
    %923 = vmatpush1.msra.mxu0 %v866
    %924 = vmatprep.subr.mxu0 0.0
    %925 = vmatpush1.msra.mxu0 %v867
    %926 = vmatprep.subr.mxu0 0.0
    %927 = vmatpush1.msra.mxu0 %v868
    %928 = vmatprep.subr.mxu0 0.0
    %929 = vmatpush1.msra.mxu0 %v869
    %930 = vmatprep.subr.mxu0 0.0
    %931 = vmatpush1.msra.mxu0 %v870
    %932 = vmatprep.subr.mxu0 0.0
    %933 = vmatpush1.msra.mxu0 %v871
    %934 = vmatprep.subr.mxu0 0.0
    %935 = vmatpush1.msra.mxu0 %v872
    %936 = vmatprep.subr.mxu0 0.0
    %937 = vmatpush1.msra.mxu0 %v873
    %938 = vmatprep.subr.mxu0 0.0
    %939 = vmatpush1.msra.mxu0 %v874
    %940 = vmatprep.subr.mxu0 0.0
    %941 = vmatpush1.msra.mxu0 %v875
    %942 = vmatprep.subr.mxu0 0.0
    %943 = vmatpush1.msra.mxu0 %v876
    %944 = vmatprep.subr.mxu0 0.0
    %945 = vmatpush1.msra.mxu0 %v877
    %946 = vmatprep.subr.mxu0 0.0
    %947 = vmatpush1.msra.mxu0 %v878
    %948 = vmatprep.subr.mxu0 0.0
    %949 = vmatpush1.msra.mxu0 %v879
    %950 = vmatprep.subr.mxu0 0.0
    %951 = vmatpush1.msra.mxu0 %v880
    %952 = vmatprep.subr.mxu0 0.0
    %953 = vmatpush1.msra.mxu0 %v881
    %954 = vmatprep.subr.mxu0 0.0
    %955 = vmatpush1.msra.mxu0 %v882
    %956 = vmatprep.subr.mxu0 0.0
    %957 = vmatpush1.msra.mxu0 %v883
    %958 = vmatprep.subr.mxu0 0.0
    %959 = vmatpush1.msra.mxu0 %v884
    %960 = vmatprep.subr.mxu0 0.0
    %961 = vmatpush1.msra.mxu0 %v885
    %962 = vmatprep.subr.mxu0 0.0
    %963 = vmatpush1.msra.mxu0 %v886
    %964 = vmatprep.subr.mxu0 0.0
    %965 = vmatpush1.msra.mxu0 %v887
    %966 = vmatprep.subr.mxu0 0.0
    %967 = vmatpush1.msra.mxu0 %v888
    %968 = vmatprep.subr.mxu0 0.0
    %969 = vmatpush1.msra.mxu0 %v889
    %970 = vmatprep.subr.mxu0 0.0
    %971 = vmatpush1.msra.mxu0 %v890
    %972 = vmatprep.subr.mxu0 0.0
    %973 = vmatpush1.msra.mxu0 %v891
    %974 = vmatprep.subr.mxu0 0.0
    %975 = vmatpush1.msra.mxu0 %v892
    %976 = vmatprep.subr.mxu0 0.0
    %977 = vmatpush1.msra.mxu0 %v893
    %978 = vmatprep.subr.mxu0 0.0
    %979 = vmatpush1.msra.mxu0 %v894
    %980 = vmatprep.subr.mxu0 0.0
    %981 = vmatpush1.msra.mxu0 %v895
    %982 = vmatprep.subr.mxu0 0.0
    %983 = vmatpush1.msra.mxu0 %v896
    %984 = vmatprep.mubr.f32.mxu0 %v857
    %985 = vmatmul.mubr.f32.gmra.mrb[0].mxu0 %v853
    %v986 = vpop.f32.mrb[0].mxu0
    %v987 = vadd.f32 %v918, %v986
    %v988 = vpop.f32.mrb[0].mxu0
    %989 = vmatprep.mubr.f32.mxu0 %v858
    %990 = vmatmul.mubr.f32.gmra.mrb[0].mxu0 %v854
    %v991 = vpop.f32.mrb[0].mxu0
    %v992 = vadd.f32 %v918, %v991
    %v993 = vpop.f32.mrb[0].mxu0
    %994 = vmatprep.mubr.f32.mxu0 %v859
    %995 = vmatmul.mubr.f32.gmra.mrb[0].mxu0 %v855
    %v996 = vpop.f32.mrb[0].mxu0
    %v997 = vadd.f32 %v918, %v996
    %v998 = vpop.f32.mrb[0].mxu0
    %999 = vmatprep.mubr.f32.mxu0 %v860
    %1000 = vmatmul.mubr.f32.gmra.mrb[0].mxu0 %v856
    %v1001 = vpop.f32.mrb[0].mxu0
    %v1002 = vadd.f32 %v918, %v1001
    %v1003 = vpop.f32.mrb[0].mxu0
    %1004 = vdwg.mxu0
    %1005 = vmatprep.subr.mxu0 0.0
    %1006 = vmatpush1.msra.mxu0 %v897
    %1007 = vmatprep.subr.mxu0 0.0
    %1008 = vmatpush1.msra.mxu0 %v898
    %1009 = vmatprep.subr.mxu0 0.0
    %1010 = vmatpush1.msra.mxu0 %v899
    %1011 = vmatprep.subr.mxu0 0.0
    %1012 = vmatpush1.msra.mxu0 %v900
    %1013 = vmatprep.subr.mxu0 0.0
    %1014 = vmatpush1.msra.mxu0 %v901
    %1015 = vmatprep.subr.mxu0 0.0
    %1016 = vmatpush1.msra.mxu0 %v902
    %1017 = vmatprep.subr.mxu0 0.0
    %1018 = vmatpush1.msra.mxu0 %v903
    %1019 = vmatprep.subr.mxu0 0.0
    %1020 = vmatpush1.msra.mxu0 %v904
    %1021 = vmatprep.subr.mxu0 0.0
    %1022 = vmatpush1.msra.mxu0 %v905
    %1023 = vmatprep.subr.mxu0 0.0
    %1024 = vmatpush1.msra.mxu0 %v906
    %1025 = vmatprep.subr.mxu0 0.0
    %1026 = vmatpush1.msra.mxu0 %v907
    %1027 = vmatprep.subr.mxu0 0.0
    %1028 = vmatpush1.msra.mxu0 %v908
    %1029 = vmatprep.subr.mxu0 0.0
    %1030 = vmatpush1.msra.mxu0 %v909
    %1031 = vmatprep.subr.mxu0 0.0
    %1032 = vmatpush1.msra.mxu0 %v910
    %1033 = vmatprep.subr.mxu0 0.0
    %1034 = vmatpush1.msra.mxu0 %v911
    %1035 = vmatprep.subr.mxu0 0.0
    %1036 = vmatpush1.msra.mxu0 %v912
    %1037 = vmatprep.subr.mxu0 0.0
    %1038 = vmatpush1.msra.mxu0 0.0
    %1039 = vmatprep.subr.mxu0 0.0
    %1040 = vmatpush1.msra.mxu0 0.0
    %1041 = vmatprep.subr.mxu0 0.0
    %1042 = vmatpush1.msra.mxu0 0.0
    %1043 = vmatprep.subr.mxu0 0.0
    %1044 = vmatpush1.msra.mxu0 0.0
    %1045 = vmatprep.subr.mxu0 0.0
    %1046 = vmatpush1.msra.mxu0 0.0
    %1047 = vmatprep.subr.mxu0 0.0
    %1048 = vmatpush1.msra.mxu0 0.0
    %1049 = vmatprep.subr.mxu0 0.0
    %1050 = vmatpush1.msra.mxu0 0.0
    %1051 = vmatprep.subr.mxu0 0.0
    %1052 = vmatpush1.msra.mxu0 0.0
    %1053 = vmatprep.subr.mxu0 0.0
    %1054 = vmatpush1.msra.mxu0 0.0
    %1055 = vmatprep.subr.mxu0 0.0
    %1056 = vmatpush1.msra.mxu0 0.0
    %1057 = vmatprep.subr.mxu0 0.0
    %1058 = vmatpush1.msra.mxu0 0.0
    %1059 = vmatprep.subr.mxu0 0.0
    %1060 = vmatpush1.msra.mxu0 0.0
    %1061 = vmatprep.subr.mxu0 0.0
    %1062 = vmatpush1.msra.mxu0 0.0
    %1063 = vmatprep.subr.mxu0 0.0
    %1064 = vmatpush1.msra.mxu0 0.0
    %1065 = vmatprep.subr.mxu0 0.0
    %1066 = vmatpush1.msra.mxu0 0.0
    %1067 = vmatprep.subr.mxu0 0.0
    %1068 = vmatpush1.msra.mxu0 0.0
    %1069 = vmatprep.mubr.f32.mxu0 0.0
    %1070 = vmatmul.mubr.f32.gmra.mrb[0].mxu0 %v861
    %v1071 = vpop.f32.mrb[0].mxu0
    %v1072 = vadd.f32 %v987, %v1071
    %v1073 = vpop.f32.mrb[0].mxu0
    %1074 = vmatprep.mubr.f32.mxu0 0.0
    %1075 = vmatmul.mubr.f32.gmra.mrb[0].mxu0 %v862
    %v1076 = vpop.f32.mrb[0].mxu0
    %v1077 = vadd.f32 %v992, %v1076
    %v1078 = vpop.f32.mrb[0].mxu0
    %1079 = vmatprep.mubr.f32.mxu0 0.0
    %1080 = vmatmul.mubr.f32.gmra.mrb[0].mxu0 %v863
    %v1081 = vpop.f32.mrb[0].mxu0
    %v1082 = vadd.f32 %v997, %v1081
    %v1083 = vpop.f32.mrb[0].mxu0
    %1084 = vmatprep.mubr.f32.mxu0 0.0
    %1085 = vmatmul.mubr.f32.gmra.mrb[0].mxu0 %v864
    %v1086 = vpop.f32.mrb[0].mxu0
    %v1087 = vadd.f32 %v1002, %v1086
    %v1088 = vpop.f32.mrb[0].mxu0
    %1089 = vdwg.mxu0
    %v1090 = vmax.f32 %v1072, 0.0
    %v1091 = vmax.f32 %v1077, 0.0
    %v1092 = vmax.f32 %v1082, 0.0
    %v1093 = vmax.f32 %v1087, 0.0
    %v1094 = vld [vmem:[#allocation12] sm:$0xff]
    %v1095 = vld [vmem:[#allocation12 + $0x8] sm:$0xff]
    %v1096 = vld [vmem:[#allocation12 + $0x10] sm:$0xff]
    %v1097 = vld [vmem:[#allocation12 + $0x18] sm:$0xff]
    %v1098 = vld [vmem:[#allocation12 + $0x20] sm:$0xff]
    %v1099 = vld [vmem:[#allocation12 + $0x28] sm:$0xff]
    %v1100 = vld [vmem:[#allocation12 + $0x30] sm:$0xff]
    %v1101 = vld [vmem:[#allocation12 + $0x38] sm:$0xff]
    %v1102 = vld [vmem:[#allocation12 + $0x40] sm:$0xff]
    %v1103 = vld [vmem:[#allocation12 + $0x48] sm:$0xff]
    %v1104 = vld [vmem:[#allocation12 + $0x50] sm:$0xff]
    %v1105 = vld [vmem:[#allocation12 + $0x58] sm:$0xff]
    %v1106 = vld [vmem:[#allocation12 + $0x60] sm:$0xff]
    %v1107 = vld [vmem:[#allocation12 + $0x68] sm:$0xff]
    %v1108 = vld [vmem:[#allocation12 + $0x70] sm:$0xff]
    %v1109 = vld [vmem:[#allocation12 + $0x78] sm:$0xff]
    %s1110 = sld [smem:[#allocation3]]
    %v1111 = vstv %s1110
    %1112 = vmatprep.subr.mxu0 0.0
    %1113 = vmatpush1.msra.mxu0 %v1094
    %1114 = vmatprep.subr.mxu0 0.0
    %1115 = vmatpush1.msra.mxu0 %v1095
    %1116 = vmatprep.subr.mxu0 0.0
    %1117 = vmatpush1.msra.mxu0 %v1096
    %1118 = vmatprep.subr.mxu0 0.0
    %1119 = vmatpush1.msra.mxu0 %v1097
    %1120 = vmatprep.subr.mxu0 0.0
    %1121 = vmatpush1.msra.mxu0 %v1098
    %1122 = vmatprep.subr.mxu0 0.0
    %1123 = vmatpush1.msra.mxu0 %v1099
    %1124 = vmatprep.subr.mxu0 0.0
    %1125 = vmatpush1.msra.mxu0 %v1100
    %1126 = vmatprep.subr.mxu0 0.0
    %1127 = vmatpush1.msra.mxu0 %v1101
    %1128 = vmatprep.subr.mxu0 0.0
    %1129 = vmatpush1.msra.mxu0 %v1102
    %1130 = vmatprep.subr.mxu0 0.0
    %1131 = vmatpush1.msra.mxu0 %v1103
    %1132 = vmatprep.subr.mxu0 0.0
    %1133 = vmatpush1.msra.mxu0 %v1104
    %1134 = vmatprep.subr.mxu0 0.0
    %1135 = vmatpush1.msra.mxu0 %v1105
    %1136 = vmatprep.subr.mxu0 0.0
    %1137 = vmatpush1.msra.mxu0 %v1106
    %1138 = vmatprep.subr.mxu0 0.0
    %1139 = vmatpush1.msra.mxu0 %v1107
    %1140 = vmatprep.subr.mxu0 0.0
    %1141 = vmatpush1.msra.mxu0 %v1108
    %1142 = vmatprep.subr.mxu0 0.0
    %1143 = vmatpush1.msra.mxu0 %v1109
    %1144 = vmatprep.subr.mxu0 0.0
    %1145 = vmatpush1.msra.mxu0 0.0
    %1146 = vmatprep.subr.mxu0 0.0
    %1147 = vmatpush1.msra.mxu0 0.0
    %1148 = vmatprep.subr.mxu0 0.0
    %1149 = vmatpush1.msra.mxu0 0.0
    %1150 = vmatprep.subr.mxu0 0.0
    %1151 = vmatpush1.msra.mxu0 0.0
    %1152 = vmatprep.subr.mxu0 0.0
    %1153 = vmatpush1.msra.mxu0 0.0
    %1154 = vmatprep.subr.mxu0 0.0
    %1155 = vmatpush1.msra.mxu0 0.0
    %1156 = vmatprep.subr.mxu0 0.0
    %1157 = vmatpush1.msra.mxu0 0.0
    %1158 = vmatprep.subr.mxu0 0.0
    %1159 = vmatpush1.msra.mxu0 0.0
    %1160 = vmatprep.subr.mxu0 0.0
    %1161 = vmatpush1.msra.mxu0 0.0
    %1162 = vmatprep.subr.mxu0 0.0
    %1163 = vmatpush1.msra.mxu0 0.0
    %1164 = vmatprep.subr.mxu0 0.0
    %1165 = vmatpush1.msra.mxu0 0.0
    %1166 = vmatprep.subr.mxu0 0.0
    %1167 = vmatpush1.msra.mxu0 0.0
    %1168 = vmatprep.subr.mxu0 0.0
    %1169 = vmatpush1.msra.mxu0 0.0
    %1170 = vmatprep.subr.mxu0 0.0
    %1171 = vmatpush1.msra.mxu0 0.0
    %1172 = vmatprep.subr.mxu0 0.0
    %1173 = vmatpush1.msra.mxu0 0.0
    %1174 = vmatprep.subr.mxu0 0.0
    %1175 = vmatpush1.msra.mxu0 0.0
    %1176 = vmatprep.mubr.f32.mxu0 0.0
    %1177 = vmatmul.mubr.f32.gmra.mrb[0].mxu0 %v1090
    %v1178 = vpop.f32.mrb[0].mxu0
    %v1179 = vadd.f32 %v1111, %v1178
    %v1180 = vpop.f32.mrb[0].mxu0
    %1181 = vmatprep.mubr.f32.mxu0 0.0
    %1182 = vmatmul.mubr.f32.gmra.mrb[0].mxu0 %v1091
    %v1183 = vpop.f32.mrb[0].mxu0
    %v1184 = vadd.f32 %v1111, %v1183
    %v1185 = vpop.f32.mrb[0].mxu0
    %1186 = vmatprep.mubr.f32.mxu0 0.0
    %1187 = vmatmul.mubr.f32.gmra.mrb[0].mxu0 %v1092
    %v1188 = vpop.f32.mrb[0].mxu0
    %v1189 = vadd.f32 %v1111, %v1188
    %v1190 = vpop.f32.mrb[0].mxu0
    %1191 = vmatprep.mubr.f32.mxu0 0.0
    %1192 = vmatmul.mubr.f32.gmra.mrb[0].mxu0 %v1093
    %v1193 = vpop.f32.mrb[0].mxu0
    %v1194 = vadd.f32 %v1111, %v1193
    %v1195 = vpop.f32.mrb[0].mxu0
    %1196 = vdwg.mxu0
    %1197 = vst [vmem:[#allocation13] sm:$0xff] %v1179
    %1198 = vst [vmem:[#allocation13 + $0x8] sm:$0xff] %v1184
    %1199 = vst [vmem:[#allocation13 + $0x10] sm:$0xff] %v1189
    %1200 = vst [vmem:[#allocation13 + $0x18] sm:$0xff] %v1194
    // Predicated region
    $region54: #{tpu_custom_call.1} parent=1 // pred_check
      _
    $region55: #{tpu_custom_call.1} parent=1 // pred_check_branch
      %1202 = sbr.rel (0) target = $region57
    $region56: #{tpu_custom_call.1} parent=1 // pred_region
      %s1204 = ssub.s32 512, 512
      %1205 = vsyncadd [#allocation6], %s1204
      %s1206 = sshll.u32 [#allocation13], 4
      %s1207 = int_to_ptr.vmem [resolvable:$true] %s1206
      %1212 = dma.vmem_to_hbm [thread:$0]  %s1207, 512, %s8, [#allocation6], 128, 128, 8
    $region57: #{tpu_custom_call.1} parent=1 // pred_fallthru
      _
    // Predicated region
    $region58: #{tpu_custom_call.1} parent=1 // pred_check
      _
    $region59: #{tpu_custom_call.1} parent=1 // pred_check_branch
      %1214 = sbr.rel (0) target = $region61
    $region60: #{tpu_custom_call.1} parent=1 // pred_region
      %s1216 = ssub.s32 640, 640
      %1217 = vsyncadd [#allocation15], %s1216
      %s1218 = sshll.u32 [#allocation14], 4
      %s1219 = int_to_ptr.vmem [resolvable:$true] %s1218
      %1224 = dma.vmem_to_hbm [thread:$0]  %s1219, 640, %s9, [#allocation15], 128, 128, 8
    $region61: #{tpu_custom_call.1} parent=1 // pred_fallthru
      _
    // Predicated region
    $region62: #{tpu_custom_call.1} parent=1 // pred_check
      _
    $region63: #{tpu_custom_call.1} parent=1 // pred_check_branch
      %1226 = sbr.rel (0) target = $region65
    $region64: #{tpu_custom_call.1} parent=1 // pred_region
      %1227 = dma.done [#allocation6], 512
    $region65: #{tpu_custom_call.1} parent=1 // pred_fallthru
      _
    // Predicated region
    $region66: #{tpu_custom_call.1} parent=1 // pred_check
      _
    $region67: #{tpu_custom_call.1} parent=1 // pred_check_branch
      %1229 = sbr.rel (0) target = $region69
    $region68: #{tpu_custom_call.1} parent=1 // pred_region
      %1230 = dma.done [#allocation15], 640
    $region69: #{tpu_custom_call.1} parent=1 // pred_fallthru
      _
    %1231 = vsyncpa [#allocation5], 1
    %1232 = vsyncpa [#allocation8], 1
    %1233 = vsyncpa [#allocation11], 1
    %1234 = vsyncpa [#allocation6], 1
    %1235 = vsyncpa [#allocation15], 1

</llo_original>
